<compile_context>
chip_gen: v7x
topology: tpu7x:2x2x1
jax: 0.10.0
libtpu: 0.0.40
codegen_flags: <defaults>
</compile_context>

<pallas_src>
import jax
import jax.numpy as jnp
import numpy as np
from jax.experimental import pallas as pl
from jax.experimental.pallas import tpu as pltpu

EPS = 1e-5
LANE = 128                     # pad GEMM output columns to the lane width
TM_DEFAULT = 256               # row tile; for realistic UNet sizes use 512-1024
                               # on v5e/v6e and ~half that on v7x (64 MiB VMEM)
VMEM_LIMIT = 32 * 1024 * 1024  # explicit scoped-VMEM limit, safe on v5e/v6e/v7x


def _round_up(x, m):
    return (x + m - 1) // m * m


def _choose_tile(m, tm=TM_DEFAULT):
    t = min(tm, _round_up(m, 8))
    return t, _round_up(m, t)


# ----------------------------------------------------------------------------
# Pallas kernels
# ----------------------------------------------------------------------------
def _gemm_kernel(x_ref, w_ref, o_ref):
    # bf16 x bf16 -> f32 accumulate on the MXU
    o_ref[...] = jnp.dot(x_ref[...], w_ref[...],
                         preferred_element_type=jnp.float32).astype(o_ref.dtype)


def _gemm_stats_kernel(x_ref, w_ref, o_ref, s_ref):
    # Conv-as-GEMM tile plus per-tile BN partial statistics (sum, sum of sq).
    acc = jnp.dot(x_ref[...], w_ref[...], preferred_element_type=jnp.float32)
    o_ref[...] = acc
    ssum = jnp.sum(acc, axis=0, keepdims=True)          # (1, C)
    ssq = jnp.sum(acc * acc, axis=0, keepdims=True)     # (1, C)
    pad = jnp.zeros((6, acc.shape[1]), jnp.float32)
    s_ref[...] = jnp.concatenate([ssum, ssq, pad], axis=0)   # (8, C) full tile


def _bn_relu_kernel(x_ref, sc_ref, sh_ref, o_ref):
    # y = relu(x * scale + shift); scale/shift carry the batch mean/var+gamma/beta
    h = x_ref[...] * sc_ref[...] + sh_ref[...]
    o_ref[...] = jnp.maximum(h, 0.0).astype(o_ref.dtype)


# ----------------------------------------------------------------------------
# Pallas wrappers (tiled over the M = N*H*W axis, "parallel" grid)
# ----------------------------------------------------------------------------
def pallas_gemm(x, w, out_dtype, tm):
    M, K = x.shape
    _, N = w.shape
    assert M % tm == 0
    return pl.pallas_call(
        _gemm_kernel,
        out_shape=jax.ShapeDtypeStruct((M, N), out_dtype),
        grid=(M // tm,),
        in_specs=[pl.BlockSpec((tm, K), lambda i: (i, 0)),
                  pl.BlockSpec((K, N), lambda i: (0, 0))],
        out_specs=pl.BlockSpec((tm, N), lambda i: (i, 0)),
        compiler_params=pltpu.CompilerParams(
            dimension_semantics=("parallel",),
            vmem_limit_bytes=VMEM_LIMIT),
    )(x, w)


def pallas_gemm_stats(x, w, tm):
    M, K = x.shape
    _, N = w.shape
    assert M % tm == 0
    nt = M // tm
    cost = pl.CostEstimate(
        flops=2 * M * K * N,
        transcendentals=0,
        bytes_accessed=M * K * 2 + K * N * 2 + M * N * 4 + nt * 8 * N * 4)
    return pl.pallas_call(
        _gemm_stats_kernel,
        out_shape=(jax.ShapeDtypeStruct((M, N), jnp.float32),
                   jax.ShapeDtypeStruct((nt * 8, N), jnp.float32)),
        grid=(nt,),
        in_specs=[pl.BlockSpec((tm, K), lambda i: (i, 0)),
                  pl.BlockSpec((K, N), lambda i: (0, 0))],
        out_specs=(pl.BlockSpec((tm, N), lambda i: (i, 0)),
                   pl.BlockSpec((8, N), lambda i: (i, 0))),
        compiler_params=pltpu.CompilerParams(
            dimension_semantics=("parallel",),
            vmem_limit_bytes=VMEM_LIMIT),
        cost_estimate=cost,
    )(x, w)


def pallas_bn_relu(x, scale, shift, out_dtype, tm):
    M, N = x.shape
    assert M % tm == 0
    return pl.pallas_call(
        _bn_relu_kernel,
        out_shape=jax.ShapeDtypeStruct((M, N), out_dtype),
        grid=(M // tm,),
        in_specs=[pl.BlockSpec((tm, N), lambda i: (i, 0)),
                  pl.BlockSpec((1, N), lambda i: (0, 0)),
                  pl.BlockSpec((1, N), lambda i: (0, 0))],
        out_specs=pl.BlockSpec((tm, N), lambda i: (i, 0)),
        compiler_params=pltpu.CompilerParams(
            dimension_semantics=("parallel",),
            vmem_limit_bytes=VMEM_LIMIT),
    )(x, scale, shift)


# ----------------------------------------------------------------------------
# Glue / layer drivers
# ----------------------------------------------------------------------------
def im2col_3x3(x_nhwc):
    """(N,H,W,C) -> (N*H*W, 9*C) patches for a 3x3 'same' conv (padding=1)."""
    N, H, W, C = x_nhwc.shape
    xp = jnp.pad(x_nhwc, ((0, 0), (1, 1), (1, 1), (0, 0)))
    cols = [xp[:, dy:dy + H, dx:dx + W, :] for dy in range(3) for dx in range(3)]
    return jnp.concatenate(cols, axis=-1).reshape(N * H * W, 9 * C)


def conv_transpose_2x2(x_nhwc, wt):
    """ConvTranspose2d(kernel=2, stride=2, bias=False); wt is the torch
    (Cin, Cout, 2, 2) weight. Returns bf16 NHWC at 2x spatial size."""
    N, H, W, Ci = x_nhwc.shape
    Co = wt.shape[1]
    M = N * H * W
    tm, Mp = _choose_tile(M)
    Npad = _round_up(4 * Co, LANE)

    wm = jnp.transpose(wt, (0, 2, 3, 1)).reshape(Ci, 4 * Co)        # (Ci, ky*kx*Co)
    wm = jnp.pad(wm, ((0, 0), (0, Npad - 4 * Co))).astype(jnp.bfloat16)
    xf = jnp.pad(x_nhwc.reshape(M, Ci).astype(jnp.bfloat16),
                 ((0, Mp - M), (0, 0)))

    y = pallas_gemm(xf, wm, jnp.bfloat16, tm)[:M, :4 * Co]
    # pixel shuffle: y[n,i,j,ky,kx,co] -> up[n, 2i+ky, 2j+kx, co]
    return (y.reshape(N, H, W, 2, 2, Co)
             .transpose(0, 1, 3, 2, 4, 5)
             .reshape(N, 2 * H, 2 * W, Co))


def conv3x3_bn_relu(x_nhwc, w_oihw, gamma, beta, out_dtype):
    """Conv2d(3x3, pad=1, bias=False) + BatchNorm2d(training mode) + ReLU."""
    N, H, W, Cin = x_nhwc.shape
    Cout = w_oihw.shape[0]
    Cpad = _round_up(Cout, LANE)
    M = N * H * W
    tm, Mp = _choose_tile(M)

    patches = im2col_3x3(x_nhwc.astype(jnp.bfloat16))                # (M, 9*Cin)
    patches = jnp.pad(patches, ((0, Mp - M), (0, 0)))
    wm = jnp.transpose(w_oihw, (2, 3, 1, 0)).reshape(9 * Cin, Cout)  # (ky,kx,i,o)
    wm = jnp.pad(wm, ((0, 0), (0, Cpad - Cout))).astype(jnp.bfloat16)

    # Pass 1: tiled conv GEMM + per-tile BN partial sums.
    conv_out, stats = pallas_gemm_stats(patches, wm, tm)
    # Tiny XLA reduction over tiles -> batch mean/var -> fused scale/shift.
    # (Padded rows/channels contribute exact zeros; divide by the true M.)
    st = stats.reshape(Mp // tm, 8, Cpad)
    mean = st[:, 0, :].sum(axis=0) / M
    var = jnp.maximum(st[:, 1, :].sum(axis=0) / M - mean * mean, 0.0)
    g = jnp.pad(gamma.reshape(-1).astype(jnp.float32), (0, Cpad - Cout))
    b = jnp.pad(beta.reshape(-1).astype(jnp.float32), (0, Cpad - Cout))
    inv = jax.lax.rsqrt(var + EPS)
    scale = (g * inv).reshape(1, Cpad)
    shift = (b - mean * g * inv).reshape(1, Cpad)

    # Pass 2: tiled affine + ReLU.
    h = pallas_bn_relu(conv_out, scale, shift, out_dtype, tm)
    return h[:M, :Cout].reshape(N, H, W, Cout)


def decoder_block_forward(x1_nchw, x2_nchw, params):
    """DecoderBlock.forward(x1, x2). Inputs NCHW, output NCHW f32."""
    x1 = jnp.transpose(x1_nchw, (0, 2, 3, 1))
    x2 = jnp.transpose(x2_nchw, (0, 2, 3, 1))

    up = conv_transpose_2x2(x1, params["w_trans"])
    # TODO(synk): fold the 2x2/stride-2 transposed conv + concat directly into
    # the conv1 kernel to drop the pixel-shuffle/concat HBM round trip.
    x = jnp.concatenate([up, x2.astype(jnp.bfloat16)], axis=-1)

    # TODO(synk): replace the XLA im2col with an in-kernel 9-shifted-matmul
    # conv over row tiles with a 1-row halo (manual make_async_copy), keeping
    # h1 resident in VMEM between the two convs.
    h1 = conv3x3_bn_relu(x, params["w1"], params["g1"], params["b1"],
                         out_dtype=jnp.bfloat16)
    h2 = conv3x3_bn_relu(h1, params["w2"], params["g2"], params["b2"],
                         out_dtype=jnp.float32)

    # Dropout(p=0.0) is the identity.
    # TODO(synk): for dropout p>0 in training, mask via pltpu.prng_random_bits.
    return jnp.transpose(h2, (0, 3, 1, 2))


# ----------------------------------------------------------------------------
# Pure-JAX f32 reference (correctness sanity check)
# ----------------------------------------------------------------------------
def ref_forward(x1, x2, params):
    x1 = x1.astype(jnp.float32)
    x2 = x2.astype(jnp.float32)
    N, Ci, H, W = x1.shape
    wt = params["w_trans"]                        # (Ci, Co, 2, 2)
    Co = wt.shape[1]
    up = jnp.einsum("nihw,iokl->nohkwl", x1, wt).reshape(N, Co, 2 * H, 2 * W)
    x = jnp.concatenate([up, x2], axis=1)

    def conv3x3(v, w):
        return jax.lax.conv_general_dilated(
            v, w, (1, 1), ((1, 1), (1, 1)),
            dimension_numbers=("NCHW", "OIHW", "NCHW"))

    def bn(v, g, b):
        mean = v.mean(axis=(0, 2, 3), keepdims=True)
        var = v.var(axis=(0, 2, 3), keepdims=True)
        return ((v - mean) / jnp.sqrt(var + EPS)
                * g.reshape(1, -1, 1, 1) + b.reshape(1, -1, 1, 1))

    h = jnp.maximum(bn(conv3x3(x, params["w1"]), params["g1"], params["b1"]), 0.0)
    h = jnp.maximum(bn(conv3x3(h, params["w2"]), params["g2"], params["b2"]), 0.0)
    return h


# ----------------------------------------------------------------------------
# Main
# ----------------------------------------------------------------------------
if __name__ == "__main__":
    # DecoderBlock(up_in_channels=8, up_out_channels=8, in_channels=16,
    #              out_channels=16, bias=False, dropout=0.0)
    B, UP_IN, UP_OUT, SKIP_C, OUT_C = 2, 8, 8, 8, 16
    H1 = W1 = 8                                   # x1 spatial; x2 is 2x larger
    IN_C = UP_OUT + SKIP_C                        # channels after concat

    key = jax.random.PRNGKey(0)
    ks = jax.random.split(key, 8)
    x1 = jax.random.normal(ks[0], (B, UP_IN, H1, W1), jnp.float32)
    x2 = jax.random.normal(ks[1], (B, SKIP_C, 2 * H1, 2 * W1), jnp.float32)

    params = {
        "w_trans": 0.1 * jax.random.normal(ks[2], (UP_IN, UP_OUT, 2, 2), jnp.float32),
        "w1": 0.1 * jax.random.normal(ks[3], (OUT_C, IN_C, 3, 3), jnp.float32),
        "w2": 0.1 * jax.random.normal(ks[4], (OUT_C, OUT_C, 3, 3), jnp.float32),
        "g1": 1.0 + 0.1 * jax.random.normal(ks[5], (1, OUT_C), jnp.float32),
        "b1": 0.1 * jax.random.normal(ks[6], (1, OUT_C), jnp.float32),
        "g2": 1.0 + 0.05 * jax.random.normal(ks[7], (1, OUT_C), jnp.float32),
        "b2": jnp.zeros((1, OUT_C), jnp.float32),
    }

    fwd = jax.jit(decoder_block_forward)
    out = jax.block_until_ready(fwd(x1, x2, params))
    assert out.shape == (B, OUT_C, 2 * H1, 2 * W1), out.shape

    ref = jax.block_until_ready(ref_forward(x1, x2, params))
    # bf16 MXU operands (f32 accumulate): compare at a bf16-appropriate tolerance.
    np.testing.assert_allclose(np.asarray(out), np.asarray(ref),
                               rtol=2e-2, atol=2e-2)

    print("KERNEL_OK")
</pallas_src>

<mosaic_0001>
module attributes {stable_mosaic.version = 11 : i64} {
  func.func @_gemm_kernel(%arg0: i32, %arg1: memref<128x8xbf16, #tpu.memory_space<vmem>>, %arg2: memref<8x128xbf16, #tpu.memory_space<vmem>>, %arg3: memref<128x128xbf16, #tpu.memory_space<vmem>>) attributes {dimension_semantics = [#tpu.dimension_semantics<parallel>], iteration_bounds = array<i64: 1>, scalar_prefetch = 0 : i64, scratch_operands = 0 : i64, tpu.core_type = #tpu.core_type<tc>, window_params = [{transform_indices = @transform_0, window_bounds = array<i64: 128, 8>}, {pipeline_mode = #tpu.pipeline_mode<synchronous>, transform_indices = @transform_1, window_bounds = array<i64: 8, 128>}, {transform_indices = @transform_2, window_bounds = array<i64: 128, 128>}]} {
    %c0 = arith.constant 0 : index
    %c0_0 = arith.constant 0 : index
    %0 = vector.load %arg1[%c0, %c0_0] : memref<128x8xbf16, #tpu.memory_space<vmem>>, vector<128x8xbf16>
    %c0_1 = arith.constant 0 : index
    %c0_2 = arith.constant 0 : index
    %1 = vector.load %arg2[%c0_1, %c0_2] : memref<8x128xbf16, #tpu.memory_space<vmem>>, vector<8x128xbf16>
    %cst = arith.constant dense<0.000000e+00> : vector<128x128xf32>
    %2 = tpu.matmul %0, %1, %cst {dimension_numbers = #tpu.dot_dimension_numbers<[1], [0], [0], [1], [0, 0, 1, 1], [], []>} : vector<128x8xbf16>, vector<8x128xbf16>, vector<128x128xf32> -> vector<128x128xf32>
    %3 = arith.truncf %2 : vector<128x128xf32> to vector<128x128xbf16>
    %c0_3 = arith.constant 0 : index
    %c0_4 = arith.constant 0 : index
    %4 = vector.load %arg3[%c0_3, %c0_4] : memref<128x128xbf16, #tpu.memory_space<vmem>>, vector<128x128xbf16>
    tpu.vector_store %arg3[%c0_3, %c0_4], %3 {strides = array<i32>} : memref<128x128xbf16, #tpu.memory_space<vmem>>, vector<128x128xbf16>,
    return
  }
  func.func @transform_0(%arg0: i32) -> (i32, i32) {
    %c0_i32 = arith.constant 0 : i32
    %c0_i32_0 = arith.constant 0 : i32
    return %arg0, %c0_i32 : i32, i32
  }
  func.func @transform_1(%arg0: i32) -> (i32, i32) {
    %c0_i32 = arith.constant 0 : i32
    %c0_i32_0 = arith.constant 0 : i32
    %c0_i32_1 = arith.constant 0 : i32
    return %c0_i32, %c0_i32_0 : i32, i32
  }
  func.func @transform_2(%arg0: i32) -> (i32, i32) {
    %c0_i32 = arith.constant 0 : i32
    %c0_i32_0 = arith.constant 0 : i32
    return %arg0, %c0_i32 : i32, i32
  }
}

module attributes {stable_mosaic.version = 11 : i64} {
  func.func @_gemm_stats_kernel(%arg0: i32, %arg1: memref<256x144xbf16, #tpu.memory_space<vmem>>, %arg2: memref<144x128xbf16, #tpu.memory_space<vmem>>, %arg3: memref<256x128xf32, #tpu.memory_space<vmem>>, %arg4: memref<8x128xf32, #tpu.memory_space<vmem>>) attributes {dimension_semantics = [#tpu.dimension_semantics<parallel>], iteration_bounds = array<i64: 2>, scalar_prefetch = 0 : i64, scratch_operands = 0 : i64, tpu.core_type = #tpu.core_type<tc>, window_params = [{transform_indices = @transform_0, window_bounds = array<i64: 256, 144>}, {pipeline_mode = #tpu.pipeline_mode<synchronous>, transform_indices = @transform_1, window_bounds = array<i64: 144, 128>}, {transform_indices = @transform_2, window_bounds = array<i64: 256, 128>}, {transform_indices = @transform_3, window_bounds = array<i64: 8, 128>}]} {
    %c0 = arith.constant 0 : index
    %c0_0 = arith.constant 0 : index
    %0 = vector.load %arg1[%c0, %c0_0] : memref<256x144xbf16, #tpu.memory_space<vmem>>, vector<256x144xbf16>
    %c0_1 = arith.constant 0 : index
    %c0_2 = arith.constant 0 : index
    %1 = vector.load %arg2[%c0_1, %c0_2] : memref<144x128xbf16, #tpu.memory_space<vmem>>, vector<144x128xbf16>
    %cst = arith.constant dense<0.000000e+00> : vector<256x128xf32>
    %2 = tpu.matmul %0, %1, %cst {dimension_numbers = #tpu.dot_dimension_numbers<[1], [0], [0], [1], [0, 0, 1, 1], [], []>} : vector<256x144xbf16>, vector<144x128xbf16>, vector<256x128xf32> -> vector<256x128xf32>
    %c0_3 = arith.constant 0 : index
    %c0_4 = arith.constant 0 : index
    %3 = vector.load %arg3[%c0_3, %c0_4] : memref<256x128xf32, #tpu.memory_space<vmem>>, vector<256x128xf32>
    tpu.vector_store %arg3[%c0_3, %c0_4], %2 {strides = array<i32>} : memref<256x128xf32, #tpu.memory_space<vmem>>, vector<256x128xf32>,
    %cst_5 = arith.constant dense<0.000000e+00> : vector<128xf32>
    %4 = vector.multi_reduction <add>, %2, %cst_5 [0] : vector<256x128xf32> to vector<128xf32>
    %5 = vector.shape_cast %4 : vector<128xf32> to vector<1x128xf32>
    %6 = arith.mulf %2, %2 : vector<256x128xf32>
    %cst_6 = arith.constant dense<0.000000e+00> : vector<128xf32>
    %7 = vector.multi_reduction <add>, %6, %cst_6 [0] : vector<256x128xf32> to vector<128xf32>
    %8 = vector.shape_cast %7 : vector<128xf32> to vector<1x128xf32>
    %cst_7 = arith.constant 0.000000e+00 : f32
    %9 = vector.broadcast %cst_7 : f32 to vector<6x128xf32>
    %10 = tpu.concatenate %5, %8, %9 in 0 : vector<1x128xf32>, vector<1x128xf32>, vector<6x128xf32> -> vector<8x128xf32>
    %c0_8 = arith.constant 0 : index
    %c0_9 = arith.constant 0 : index
    %11 = vector.load %arg4[%c0_8, %c0_9] : memref<8x128xf32, #tpu.memory_space<vmem>>, vector<8x128xf32>
    tpu.vector_store %arg4[%c0_8, %c0_9], %10 {strides = array<i32>} : memref<8x128xf32, #tpu.memory_space<vmem>>, vector<8x128xf32>,
    return
  }
  func.func @transform_0(%arg0: i32) -> (i32, i32) {
    %c0_i32 = arith.constant 0 : i32
    %c0_i32_0 = arith.constant 0 : i32
    return %arg0, %c0_i32 : i32, i32
  }
  func.func @transform_1(%arg0: i32) -> (i32, i32) {
    %c0_i32 = arith.constant 0 : i32
    %c0_i32_0 = arith.constant 0 : i32
    %c0_i32_1 = arith.constant 0 : i32
    return %c0_i32, %c0_i32_0 : i32, i32
  }
  func.func @transform_2(%arg0: i32) -> (i32, i32) {
    %c0_i32 = arith.constant 0 : i32
    %c0_i32_0 = arith.constant 0 : i32
    return %arg0, %c0_i32 : i32, i32
  }
  func.func @transform_3(%arg0: i32) -> (i32, i32) {
    %c0_i32 = arith.constant 0 : i32
    %c0_i32_0 = arith.constant 0 : i32
    return %arg0, %c0_i32 : i32, i32
  }
}

module attributes {stable_mosaic.version = 11 : i64} {
  func.func @_bn_relu_kernel(%arg0: i32, %arg1: memref<256x128xf32, #tpu.memory_space<vmem>>, %arg2: memref<1x128xf32, #tpu.memory_space<vmem>>, %arg3: memref<1x128xf32, #tpu.memory_space<vmem>>, %arg4: memref<256x128xbf16, #tpu.memory_space<vmem>>) attributes {dimension_semantics = [#tpu.dimension_semantics<parallel>], iteration_bounds = array<i64: 2>, scalar_prefetch = 0 : i64, scratch_operands = 0 : i64, tpu.core_type = #tpu.core_type<tc>, window_params = [{transform_indices = @transform_0, window_bounds = array<i64: 256, 128>}, {pipeline_mode = #tpu.pipeline_mode<synchronous>, transform_indices = @transform_1, window_bounds = array<i64: 1, 128>}, {pipeline_mode = #tpu.pipeline_mode<synchronous>, transform_indices = @transform_2, window_bounds = array<i64: 1, 128>}, {transform_indices = @transform_3, window_bounds = array<i64: 256, 128>}]} {
    %c0 = arith.constant 0 : index
    %c0_0 = arith.constant 0 : index
    %0 = vector.load %arg1[%c0, %c0_0] : memref<256x128xf32, #tpu.memory_space<vmem>>, vector<256x128xf32>
    %c0_1 = arith.constant 0 : index
    %c0_2 = arith.constant 0 : index
    %1 = vector.load %arg2[%c0_1, %c0_2] : memref<1x128xf32, #tpu.memory_space<vmem>>, vector<1x128xf32>
    %2 = vector.broadcast %1 : vector<1x128xf32> to vector<256x128xf32>
    %3 = arith.mulf %0, %2 : vector<256x128xf32>
    %c0_3 = arith.constant 0 : index
    %c0_4 = arith.constant 0 : index
    %4 = vector.load %arg3[%c0_3, %c0_4] : memref<1x128xf32, #tpu.memory_space<vmem>>, vector<1x128xf32>
    %5 = vector.broadcast %4 : vector<1x128xf32> to vector<256x128xf32>
    %6 = arith.addf %3, %5 : vector<256x128xf32>
    %cst = arith.constant 0.000000e+00 : f32
    %7 = vector.broadcast %cst : f32 to vector<256x128xf32>
    %8 = arith.maximumf %6, %7 : vector<256x128xf32>
    %9 = arith.truncf %8 : vector<256x128xf32> to vector<256x128xbf16>
    %c0_5 = arith.constant 0 : index
    %c0_6 = arith.constant 0 : index
    %10 = vector.load %arg4[%c0_5, %c0_6] : memref<256x128xbf16, #tpu.memory_space<vmem>>, vector<256x128xbf16>
    tpu.vector_store %arg4[%c0_5, %c0_6], %9 {strides = array<i32>} : memref<256x128xbf16, #tpu.memory_space<vmem>>, vector<256x128xbf16>,
    return
  }
  func.func @transform_0(%arg0: i32) -> (i32, i32) {
    %c0_i32 = arith.constant 0 : i32
    %c0_i32_0 = arith.constant 0 : i32
    return %arg0, %c0_i32 : i32, i32
  }
  func.func @transform_1(%arg0: i32) -> (i32, i32) {
    %c0_i32 = arith.constant 0 : i32
    %c0_i32_0 = arith.constant 0 : i32
    %c0_i32_1 = arith.constant 0 : i32
    return %c0_i32, %c0_i32_0 : i32, i32
  }
  func.func @transform_2(%arg0: i32) -> (i32, i32) {
    %c0_i32 = arith.constant 0 : i32
    %c0_i32_0 = arith.constant 0 : i32
    %c0_i32_1 = arith.constant 0 : i32
    return %c0_i32, %c0_i32_0 : i32, i32
  }
  func.func @transform_3(%arg0: i32) -> (i32, i32) {
    %c0_i32 = arith.constant 0 : i32
    %c0_i32_0 = arith.constant 0 : i32
    return %arg0, %c0_i32 : i32, i32
  }
}

module attributes {stable_mosaic.version = 11 : i64} {
  func.func @_bn_relu_kernel(%arg0: i32, %arg1: memref<256x128xf32, #tpu.memory_space<vmem>>, %arg2: memref<1x128xf32, #tpu.memory_space<vmem>>, %arg3: memref<1x128xf32, #tpu.memory_space<vmem>>, %arg4: memref<256x128xf32, #tpu.memory_space<vmem>>) attributes {dimension_semantics = [#tpu.dimension_semantics<parallel>], iteration_bounds = array<i64: 2>, scalar_prefetch = 0 : i64, scratch_operands = 0 : i64, tpu.core_type = #tpu.core_type<tc>, window_params = [{transform_indices = @transform_0, window_bounds = array<i64: 256, 128>}, {pipeline_mode = #tpu.pipeline_mode<synchronous>, transform_indices = @transform_1, window_bounds = array<i64: 1, 128>}, {pipeline_mode = #tpu.pipeline_mode<synchronous>, transform_indices = @transform_2, window_bounds = array<i64: 1, 128>}, {transform_indices = @transform_3, window_bounds = array<i64: 256, 128>}]} {
    %c0 = arith.constant 0 : index
    %c0_0 = arith.constant 0 : index
    %0 = vector.load %arg1[%c0, %c0_0] : memref<256x128xf32, #tpu.memory_space<vmem>>, vector<256x128xf32>
    %c0_1 = arith.constant 0 : index
    %c0_2 = arith.constant 0 : index
    %1 = vector.load %arg2[%c0_1, %c0_2] : memref<1x128xf32, #tpu.memory_space<vmem>>, vector<1x128xf32>
    %2 = vector.broadcast %1 : vector<1x128xf32> to vector<256x128xf32>
    %3 = arith.mulf %0, %2 : vector<256x128xf32>
    %c0_3 = arith.constant 0 : index
    %c0_4 = arith.constant 0 : index
    %4 = vector.load %arg3[%c0_3, %c0_4] : memref<1x128xf32, #tpu.memory_space<vmem>>, vector<1x128xf32>
    %5 = vector.broadcast %4 : vector<1x128xf32> to vector<256x128xf32>
    %6 = arith.addf %3, %5 : vector<256x128xf32>
    %cst = arith.constant 0.000000e+00 : f32
    %7 = vector.broadcast %cst : f32 to vector<256x128xf32>
    %8 = arith.maximumf %6, %7 : vector<256x128xf32>
    %c0_5 = arith.constant 0 : index
    %c0_6 = arith.constant 0 : index
    %9 = vector.load %arg4[%c0_5, %c0_6] : memref<256x128xf32, #tpu.memory_space<vmem>>, vector<256x128xf32>
    tpu.vector_store %arg4[%c0_5, %c0_6], %8 {strides = array<i32>} : memref<256x128xf32, #tpu.memory_space<vmem>>, vector<256x128xf32>,
    return
  }
  func.func @transform_0(%arg0: i32) -> (i32, i32) {
    %c0_i32 = arith.constant 0 : i32
    %c0_i32_0 = arith.constant 0 : i32
    return %arg0, %c0_i32 : i32, i32
  }
  func.func @transform_1(%arg0: i32) -> (i32, i32) {
    %c0_i32 = arith.constant 0 : i32
    %c0_i32_0 = arith.constant 0 : i32
    %c0_i32_1 = arith.constant 0 : i32
    return %c0_i32, %c0_i32_0 : i32, i32
  }
  func.func @transform_2(%arg0: i32) -> (i32, i32) {
    %c0_i32 = arith.constant 0 : i32
    %c0_i32_0 = arith.constant 0 : i32
    %c0_i32_1 = arith.constant 0 : i32
    return %c0_i32, %c0_i32_0 : i32, i32
  }
  func.func @transform_3(%arg0: i32) -> (i32, i32) {
    %c0_i32 = arith.constant 0 : i32
    %c0_i32_0 = arith.constant 0 : i32
    return %arg0, %c0_i32 : i32, i32
  }
}

</mosaic_0001>

<llo_original>
// kernel: decoder_block_forward.5
$region0: #{decoder_block_forward.5}
  #allocation0 [shape = 'u32[]', space=smem, size = 0x4, offset = 0x4, fixed_abs, tag = 'smem constant byte address 0x4 - core index']
  #allocation1 [shape = 'u32[144,128]{1,0:T(1,128)}', space=vmem, size = 0x12000, scoped, tag = 'internal scratch']
  %s0 = inlined_call_operand.vmem [shape: bf16[128,8], index: 0, kind: input, shape index: {}]
  %s1 = inlined_call_operand.vmem [shape: bf16[8,128], index: 1, kind: input, shape index: {}]
  %s2 = inlined_call_operand.vmem [shape: bf16[128,128], index: 2, kind: output, shape index: {}]
  %s3 = sld [smem:[#allocation0]]
  $region18: #{decoder_block_forward.5} parent=0
    _
  %s5 = ssub.s32 1, %s3
  %s6 = scalar_select 0, %s5, %s3
  // Predicated region
  $region2: #{decoder_block_forward.5} parent=0 // pred_check
    _
  $region3: #{decoder_block_forward.5} parent=0 // pred_check_branch
    %8 = sbr.rel (0) target = $region5
  $region4: #{decoder_block_forward.5} parent=0 // pred_region
    _
  $region5: #{decoder_block_forward.5} parent=0 // pred_fallthru
    _
  // Predicated region
  $region6: #{decoder_block_forward.5} parent=0 // pred_check
    _
  $region7: #{decoder_block_forward.5} parent=0 // pred_check_branch
    %10 = sbr.rel (0) target = $region9
  $region8: #{decoder_block_forward.5} parent=0 // pred_region
    _
  $region9: #{decoder_block_forward.5} parent=0 // pred_fallthru
    _
  %v12 = vld [vmem:[%s0] sm:$0xf]
  %v13 = vld [vmem:[%s0 + $0x4] sm:$0xf]
  %v14 = vld [vmem:[%s0 + $0x8] sm:$0xf]
  %v15 = vld [vmem:[%s0 + $0xc] sm:$0xf]
  %v16 = vld [vmem:[%s0 + $0x10] sm:$0xf]
  %v17 = vld [vmem:[%s0 + $0x14] sm:$0xf]
  %v18 = vld [vmem:[%s0 + $0x18] sm:$0xf]
  %v19 = vld [vmem:[%s0 + $0x1c] sm:$0xf]
  %v20 = vld [vmem:[%s0 + $0x20] sm:$0xf]
  %v21 = vld [vmem:[%s0 + $0x24] sm:$0xf]
  %v22 = vld [vmem:[%s0 + $0x28] sm:$0xf]
  %v23 = vld [vmem:[%s0 + $0x2c] sm:$0xf]
  %v24 = vld [vmem:[%s0 + $0x30] sm:$0xf]
  %v25 = vld [vmem:[%s0 + $0x34] sm:$0xf]
  %v26 = vld [vmem:[%s0 + $0x38] sm:$0xf]
  %v27 = vld [vmem:[%s0 + $0x3c] sm:$0xf]
  %v28 = vld [vmem:[%s1] sm:$0xf]
  %v45 = vunpack.c.l.b16 %v12
  %v46 = vunpack.c.l.b16 %v13
  %v47 = vunpack.c.l.b16 %v14
  %v48 = vunpack.c.l.b16 %v15
  %v49 = vunpack.c.l.b16 %v16
  %v50 = vunpack.c.l.b16 %v17
  %v51 = vunpack.c.l.b16 %v18
  %v52 = vunpack.c.l.b16 %v19
  %v53 = vunpack.c.l.b16 %v20
  %v54 = vunpack.c.l.b16 %v21
  %v55 = vunpack.c.l.b16 %v22
  %v56 = vunpack.c.l.b16 %v23
  %v57 = vunpack.c.l.b16 %v24
  %v58 = vunpack.c.l.b16 %v25
  %v59 = vunpack.c.l.b16 %v26
  %v60 = vunpack.c.l.b16 %v27
  %v61 = vpack.c.b16 %v46, %v45
  %v62 = vpack.c.b16 %v48, %v47
  %v63 = vpack.c.b16 %v50, %v49
  %v64 = vpack.c.b16 %v52, %v51
  %v65 = vpack.c.b16 %v54, %v53
  %v66 = vpack.c.b16 %v56, %v55
  %v67 = vpack.c.b16 %v58, %v57
  %v68 = vpack.c.b16 %v60, %v59
  %vm69 = vcmask 64512
  %v71 = vsel %vm69, %v61, 0
  %v74 = vsel %vm69, %v62, 0
  %v77 = vsel %vm69, %v63, 0
  %v80 = vsel %vm69, %v64, 0
  %v83 = vsel %vm69, %v65, 0
  %v86 = vsel %vm69, %v66, 0
  %v89 = vsel %vm69, %v67, 0
  %v92 = vsel %vm69, %v68, 0
  %vm94 = vcmask 1043456
  %v96 = vsel %vm94, %v28, 0
  %98 = vmatprep.subr.bf16.mxu0 0
  %99 = vmatpush1.bf16.msra.mxu0 %v96
  %100 = vmatprep.subr.bf16.mxu0 0
  %101 = vmatpush1.bf16.msra.mxu0 0
  %102 = vmatprep.subr.bf16.mxu0 0
  %103 = vmatpush1.bf16.msra.mxu0 0
  %104 = vmatprep.subr.bf16.mxu0 0
  %105 = vmatpush1.bf16.msra.mxu0 0
  %106 = vmatprep.subr.bf16.mxu0 0
  %107 = vmatpush1.bf16.msra.mxu0 0
  %108 = vmatprep.subr.bf16.mxu0 0
  %109 = vmatpush1.bf16.msra.mxu0 0
  %110 = vmatprep.subr.bf16.mxu0 0
  %111 = vmatpush1.bf16.msra.mxu0 0
  %112 = vmatprep.subr.bf16.mxu0 0
  %113 = vmatpush1.bf16.msra.mxu0 0
  %114 = vmatprep.subr.bf16.mxu0 0
  %115 = vmatpush1.bf16.msra.mxu0 0
  %116 = vmatprep.subr.bf16.mxu0 0
  %117 = vmatpush1.bf16.msra.mxu0 0
  %118 = vmatprep.subr.bf16.mxu0 0
  %119 = vmatpush1.bf16.msra.mxu0 0
  %120 = vmatprep.subr.bf16.mxu0 0
  %121 = vmatpush1.bf16.msra.mxu0 0
  %122 = vmatprep.subr.bf16.mxu0 0
  %123 = vmatpush1.bf16.msra.mxu0 0
  %124 = vmatprep.subr.bf16.mxu0 0
  %125 = vmatpush1.bf16.msra.mxu0 0
  %126 = vmatprep.subr.bf16.mxu0 0
  %127 = vmatpush1.bf16.msra.mxu0 0
  %128 = vmatprep.subr.bf16.mxu0 0
  %129 = vmatpush1.bf16.msra.mxu0 0
  %130 = vmatprep.mubr.bf16.mxu0 0
  %131 = vmatmul.mubr.bf16.gmra.mrb[0].mxu0 %v71
  %v132 = vpop.f32.mrb[0].mxu0
  %v133 = vadd.f32 0.0, %v132
  %v134 = vpop.f32.mrb[0].mxu0
  %v135 = vpop.f32.mrb[0].mxu0
  %v136 = vadd.f32 0.0, %v135
  %v137 = vpop.f32.mrb[0].mxu0
  %138 = vmatprep.mubr.bf16.mxu0 0
  %139 = vmatmul.mubr.bf16.gmra.mrb[0].mxu0 %v74
  %v140 = vpop.f32.mrb[0].mxu0
  %v141 = vadd.f32 0.0, %v140
  %v142 = vpop.f32.mrb[0].mxu0
  %v143 = vpop.f32.mrb[0].mxu0
  %v144 = vadd.f32 0.0, %v143
  %v145 = vpop.f32.mrb[0].mxu0
  %146 = vmatprep.mubr.bf16.mxu0 0
  %147 = vmatmul.mubr.bf16.gmra.mrb[0].mxu0 %v77
  %v148 = vpop.f32.mrb[0].mxu0
  %v149 = vadd.f32 0.0, %v148
  %v150 = vpop.f32.mrb[0].mxu0
  %v151 = vpop.f32.mrb[0].mxu0
  %v152 = vadd.f32 0.0, %v151
  %v153 = vpop.f32.mrb[0].mxu0
  %154 = vmatprep.mubr.bf16.mxu0 0
  %155 = vmatmul.mubr.bf16.gmra.mrb[0].mxu0 %v80
  %v156 = vpop.f32.mrb[0].mxu0
  %v157 = vadd.f32 0.0, %v156
  %v158 = vpop.f32.mrb[0].mxu0
  %v159 = vpop.f32.mrb[0].mxu0
  %v160 = vadd.f32 0.0, %v159
  %v161 = vpop.f32.mrb[0].mxu0
  %162 = vmatprep.mubr.bf16.mxu0 0
  %163 = vmatmul.mubr.bf16.gmra.mrb[0].mxu0 %v83
  %v164 = vpop.f32.mrb[0].mxu0
  %v165 = vadd.f32 0.0, %v164
  %v166 = vpop.f32.mrb[0].mxu0
  %v167 = vpop.f32.mrb[0].mxu0
  %v168 = vadd.f32 0.0, %v167
  %v169 = vpop.f32.mrb[0].mxu0
  %170 = vmatprep.mubr.bf16.mxu0 0
  %171 = vmatmul.mubr.bf16.gmra.mrb[0].mxu0 %v86
  %v172 = vpop.f32.mrb[0].mxu0
  %v173 = vadd.f32 0.0, %v172
  %v174 = vpop.f32.mrb[0].mxu0
  %v175 = vpop.f32.mrb[0].mxu0
  %v176 = vadd.f32 0.0, %v175
  %v177 = vpop.f32.mrb[0].mxu0
  %178 = vmatprep.mubr.bf16.mxu0 0
  %179 = vmatmul.mubr.bf16.gmra.mrb[0].mxu0 %v89
  %v180 = vpop.f32.mrb[0].mxu0
  %v181 = vadd.f32 0.0, %v180
  %v182 = vpop.f32.mrb[0].mxu0
  %v183 = vpop.f32.mrb[0].mxu0
  %v184 = vadd.f32 0.0, %v183
  %v185 = vpop.f32.mrb[0].mxu0
  %186 = vmatprep.mubr.bf16.mxu0 0
  %187 = vmatmul.mubr.bf16.gmra.mrb[0].mxu0 %v92
  %v188 = vpop.f32.mrb[0].mxu0
  %v189 = vadd.f32 0.0, %v188
  %v190 = vpop.f32.mrb[0].mxu0
  %v191 = vpop.f32.mrb[0].mxu0
  %v192 = vadd.f32 0.0, %v191
  %v193 = vpop.f32.mrb[0].mxu0
  %194 = vdwg.mxu0
  %v195 = vpack.c.bf16 %v136, %v133
  %v196 = vpack.c.bf16 %v144, %v141
  %v197 = vpack.c.bf16 %v152, %v149
  %v198 = vpack.c.bf16 %v160, %v157
  %v199 = vpack.c.bf16 %v168, %v165
  %v200 = vpack.c.bf16 %v176, %v173
  %v201 = vpack.c.bf16 %v184, %v181
  %v202 = vpack.c.bf16 %v192, %v189
  %v211 = vunpack.c.l.b16 %v195
  %v212 = vunpack.c.h.b16 %v195
  %v213 = vunpack.c.l.b16 %v196
  %v214 = vunpack.c.h.b16 %v196
  %v215 = vunpack.c.l.b16 %v197
  %v216 = vunpack.c.h.b16 %v197
  %v217 = vunpack.c.l.b16 %v198
  %v218 = vunpack.c.h.b16 %v198
  %v219 = vunpack.c.l.b16 %v199
  %v220 = vunpack.c.h.b16 %v199
  %v221 = vunpack.c.l.b16 %v200
  %v222 = vunpack.c.h.b16 %v200
  %v223 = vunpack.c.l.b16 %v201
  %v224 = vunpack.c.h.b16 %v201
  %v225 = vunpack.c.l.b16 %v202
  %v226 = vunpack.c.h.b16 %v202
  %v227 = vpack.c.b16 %v211, %v211
  %v228 = vpack.c.b16 %v212, %v212
  %v229 = vpack.c.b16 %v213, %v213
  %v230 = vpack.c.b16 %v214, %v214
  %v231 = vpack.c.b16 %v215, %v215
  %v232 = vpack.c.b16 %v216, %v216
  %v233 = vpack.c.b16 %v217, %v217
  %v234 = vpack.c.b16 %v218, %v218
  %v235 = vpack.c.b16 %v219, %v219
  %v236 = vpack.c.b16 %v220, %v220
  %v237 = vpack.c.b16 %v221, %v221
  %v238 = vpack.c.b16 %v222, %v222
  %v239 = vpack.c.b16 %v223, %v223
  %v240 = vpack.c.b16 %v224, %v224
  %v241 = vpack.c.b16 %v225, %v225
  %v242 = vpack.c.b16 %v226, %v226
  %259 = vst [vmem:[%s2] sm:$0xf] %v227
  %260 = vst [vmem:[%s2 + $0x4] sm:$0xf] %v228
  %261 = vst [vmem:[%s2 + $0x8] sm:$0xf] %v229
  %262 = vst [vmem:[%s2 + $0xc] sm:$0xf] %v230
  %263 = vst [vmem:[%s2 + $0x10] sm:$0xf] %v231
  %264 = vst [vmem:[%s2 + $0x14] sm:$0xf] %v232
  %265 = vst [vmem:[%s2 + $0x18] sm:$0xf] %v233
  %266 = vst [vmem:[%s2 + $0x1c] sm:$0xf] %v234
  %267 = vst [vmem:[%s2 + $0x20] sm:$0xf] %v235
  %268 = vst [vmem:[%s2 + $0x24] sm:$0xf] %v236
  %269 = vst [vmem:[%s2 + $0x28] sm:$0xf] %v237
  %270 = vst [vmem:[%s2 + $0x2c] sm:$0xf] %v238
  %271 = vst [vmem:[%s2 + $0x30] sm:$0xf] %v239
  %272 = vst [vmem:[%s2 + $0x34] sm:$0xf] %v240
  %273 = vst [vmem:[%s2 + $0x38] sm:$0xf] %v241
  %274 = vst [vmem:[%s2 + $0x3c] sm:$0xf] %v242
  // Predicated region
  $region10: #{decoder_block_forward.5} parent=0 // pred_check
    _
  $region11: #{decoder_block_forward.5} parent=0 // pred_check_branch
    %276 = sbr.rel (0) target = $region13
  $region12: #{decoder_block_forward.5} parent=0 // pred_region
    _
  $region13: #{decoder_block_forward.5} parent=0 // pred_fallthru
    _
  // Predicated region
  $region14: #{decoder_block_forward.5} parent=0 // pred_check
    _
  $region15: #{decoder_block_forward.5} parent=0 // pred_check_branch
    %278 = sbr.rel (0) target = $region17
  $region16: #{decoder_block_forward.5} parent=0 // pred_region
    _
  $region17: #{decoder_block_forward.5} parent=0 // pred_fallthru
    _

// kernel: decoder_block_forward.6
$region0: #{decoder_block_forward.6}
  #allocation0 [shape = 'u32[]', space=smem, size = 0x4, offset = 0x4, fixed_abs, tag = 'smem constant byte address 0x4 - core index']
  #allocation1 [shape = 'u32[144,128]{1,0:T(1,128)}', space=vmem, size = 0x12000, scoped, tag = 'internal scratch']
  %s0 = inlined_call_operand.vmem [shape: bf16[512,144], index: 0, kind: input, shape index: {}]
  %s1 = inlined_call_operand.vmem [shape: bf16[144,128], index: 1, kind: input, shape index: {}]
  %s2 = inlined_call_operand.vmem [shape: f32[512,128], index: 2, kind: output, shape index: {0}]
  %s3 = inlined_call_operand.vmem [shape: f32[16,128], index: 3, kind: output, shape index: {1}]
  %4 = xla_tuple %s2, %s3
  %s5 = sld [smem:[#allocation0]]
  $region49: #{decoder_block_forward.6} parent=0
    _
  %s7 = ssub.s32 1, %s5
  %s8 = scalar_select 0, %s7, %s5
  loop: start=0, step=1, limit=4
  $region2: #{decoder_block_forward.6} parent=0 // loop_pre_header
    _
  $region3: #{decoder_block_forward.6} parent=0 // loop_header
    %s10 = sphi 0, %s14
    %p11 = scmp.ge.s32.totalorder %s10, 4
    %s20 = sphi 0, %s22
    %s23 = sphi 0, %s20
    %s24 = sphi 0, %s23
    %s40 = sphi 0, %s24
    %s44 = sphi 0, %s44
    %s46 = sphi 0, %s44
    %s47 = sphi 0, %s46
    %s61 = sphi 0, %s47
    %s67 = sphi 0, %s69
    %s70 = sphi 0, %s67
    %s71 = sphi 0, %s70
    %s87 = sphi 0, %s71
    %s93 = sphi 0, %s95
    %s96 = sphi 0, %s93
    %s97 = sphi 0, %s96
    %s113 = sphi 0, %s97
  $region4: #{decoder_block_forward.6} parent=0 // loop_header_branch
    %13 = sbr.rel (%p11) target = $region8
  $region5: #{decoder_block_forward.6} parent=0 // loop_body
    %s15 = ssub.s32 %s10, 1
    %s16 = ssub.s32 %s10, 2
    %s17 = sadd.s32 %s10, 1
    %s18 = ssub.s32 %s10, %s17
    %p19 = scmp.eq.s32.totalorder %s18, 0
    %s21 = sadd.s32 %s20, 1
    %s22 = scalar_select %p19, %s20, %s21
    %p25 = pneg %p19
    %p26 = scmp.eq.s32.totalorder %s10, 1
    %p27 = por %p25, %p26
    %p28 = scmp.ne.s32.totalorder %s20, %s23
    %p29 = scmp.eq.s32.totalorder %s10, 0
    %p30 = por %p28, %p29
    %p31 = scmp.ne.s32.totalorder %s20, %s23
    %p32 = scmp.eq.s32.totalorder %s15, 1
    %p33 = por %p31, %p32
    %p34 = scmp.ne.s32.totalorder %s23, %s24
    %p35 = scmp.eq.s32.totalorder %s15, 0
    %p36 = por %p34, %p35
    %p37 = scmp.ne.s32.totalorder %s23, %s24
    %p38 = scmp.eq.s32.totalorder %s16, 1
    %p39 = por %p37, %p38
    %p41 = scmp.ne.s32.totalorder %s24, %s40
    %p42 = scmp.eq.s32.totalorder %s16, 0
    %p43 = por %p41, %p42
    %s45 = sadd.s32 %s44, 1
    %p48 = scmp.eq.s32.totalorder %s10, 1
    %p49 = scmp.ne.s32.totalorder %s44, %s46
    %p50 = scmp.eq.s32.totalorder %s10, 0
    %p51 = por %p49, %p50
    %p52 = scmp.ne.s32.totalorder %s44, %s46
    %p53 = scmp.eq.s32.totalorder %s15, 1
    %p54 = por %p52, %p53
    %p55 = scmp.ne.s32.totalorder %s46, %s47
    %p56 = scmp.eq.s32.totalorder %s15, 0
    %p57 = por %p55, %p56
    %p58 = scmp.ne.s32.totalorder %s46, %s47
    %p59 = scmp.eq.s32.totalorder %s16, 1
    %p60 = por %p58, %p59
    %p62 = scmp.ne.s32.totalorder %s47, %s61
    %p63 = scmp.eq.s32.totalorder %s16, 0
    %p64 = por %p62, %p63
    %s65 = ssub.s32 %s10, %s17
    %p66 = scmp.eq.s32.totalorder %s65, 0
    %s68 = sadd.s32 %s67, 1
    %s69 = scalar_select %p66, %s67, %s68
    %p72 = pneg %p66
    %p73 = scmp.eq.s32.totalorder %s10, 1
    %p74 = por %p72, %p73
    %p75 = scmp.ne.s32.totalorder %s67, %s70
    %p76 = scmp.eq.s32.totalorder %s10, 0
    %p77 = por %p75, %p76
    %p78 = scmp.ne.s32.totalorder %s67, %s70
    %p79 = scmp.eq.s32.totalorder %s15, 1
    %p80 = por %p78, %p79
    %p81 = scmp.ne.s32.totalorder %s70, %s71
    %p82 = scmp.eq.s32.totalorder %s15, 0
    %p83 = por %p81, %p82
    %p84 = scmp.ne.s32.totalorder %s70, %s71
    %p85 = scmp.eq.s32.totalorder %s16, 1
    %p86 = por %p84, %p85
    %p88 = scmp.ne.s32.totalorder %s71, %s87
    %p89 = scmp.eq.s32.totalorder %s16, 0
    %p90 = por %p88, %p89
    %s91 = ssub.s32 %s10, %s17
    %p92 = scmp.eq.s32.totalorder %s91, 0
    %s94 = sadd.s32 %s93, 1
    %s95 = scalar_select %p92, %s93, %s94
    %p98 = pneg %p92
    %p99 = scmp.eq.s32.totalorder %s10, 1
    %p100 = por %p98, %p99
    %p101 = scmp.ne.s32.totalorder %s93, %s96
    %p102 = scmp.eq.s32.totalorder %s10, 0
    %p103 = por %p101, %p102
    %p104 = scmp.ne.s32.totalorder %s93, %s96
    %p105 = scmp.eq.s32.totalorder %s15, 1
    %p106 = por %p104, %p105
    %p107 = scmp.ne.s32.totalorder %s96, %s97
    %p108 = scmp.eq.s32.totalorder %s15, 0
    %p109 = por %p107, %p108
    %p110 = scmp.ne.s32.totalorder %s96, %s97
    %p111 = scmp.eq.s32.totalorder %s16, 1
    %p112 = por %p110, %p111
    %p114 = scmp.ne.s32.totalorder %s97, %s113
    %p115 = scmp.eq.s32.totalorder %s16, 0
    %p116 = por %p114, %p115
    %p117 = scmp.le.s32.totalorder 1, %s10
    %p118 = scmp.lt.s32.totalorder %s10, 3
    %p119 = pnand %p117, %p118
    %p120 = pneg %p119
    // Predicated region
    $region9: #{decoder_block_forward.6} parent=5 // pred_check
      _
    $region10: #{decoder_block_forward.6} parent=5 // pred_check_branch
      %122 = sbr.rel (%p119) target = $region12
    $region11: #{decoder_block_forward.6} parent=5 // pred_region
      %s123 = ssub.s32 %s10, 1
      // Predicated region
      $region13: #{decoder_block_forward.6} parent=11 // pred_check
        %p124 = pneg %p57
      $region14: #{decoder_block_forward.6} parent=11 // pred_check_branch
        %126 = sbr.rel (%p124) target = $region16
      $region15: #{decoder_block_forward.6} parent=11 // pred_region
        _
      $region16: #{decoder_block_forward.6} parent=11 // pred_fallthru
        _
    $region12: #{decoder_block_forward.6} parent=5 // pred_fallthru
      _
    %p127 = scmp.lt.s32.totalorder %s10, 2
    // Predicated region
    $region17: #{decoder_block_forward.6} parent=5 // pred_check
      %p128 = pneg %p127
    $region18: #{decoder_block_forward.6} parent=5 // pred_check_branch
      %130 = sbr.rel (%p128) target = $region20
    $region19: #{decoder_block_forward.6} parent=5 // pred_region
      // Predicated region
      $region21: #{decoder_block_forward.6} parent=19 // pred_check
        %p131 = pneg %p30
      $region22: #{decoder_block_forward.6} parent=19 // pred_check_branch
        %133 = sbr.rel (%p131) target = $region24
      $region23: #{decoder_block_forward.6} parent=19 // pred_region
        %s134 = smul.u32 32, %s10
        %p135 = scmp.lt.s32.totalorder %s134, 63
        %s136 = scalar_select %p135, %s134, 63
        %s137 = smul.addr %s136, 2
        %s138 = smul.addr %s137, 4
        %s139 = scalar_lea.vmem %s0, %s138
        %s140 = smul.u32 32, %s10
      $region24: #{decoder_block_forward.6} parent=19 // pred_fallthru
        _
    $region20: #{decoder_block_forward.6} parent=5 // pred_fallthru
      _
    %p141 = scmp.le.s32.totalorder 1, %s10
    %p142 = scmp.lt.s32.totalorder %s10, 3
    %p143 = pnand %p141, %p142
    %p144 = pneg %p143
    // Predicated region
    $region25: #{decoder_block_forward.6} parent=5 // pred_check
      _
    $region26: #{decoder_block_forward.6} parent=5 // pred_check_branch
      %146 = sbr.rel (%p143) target = $region28
    $region27: #{decoder_block_forward.6} parent=5 // pred_region
      %s147 = ssub.s32 %s10, 1
      %s148 = smul.u32 32, %s15
      %p149 = scmp.lt.s32.totalorder %s148, 63
      %s150 = scalar_select %p149, %s148, 63
      %s151 = smul.addr %s150, 2
      %s152 = smul.addr %s151, 4
      %s153 = scalar_lea.vmem %s0, %s152
      %p154 = pneg %p36
      %p155 = pneg %p33
      %p156 = pneg %p57
      %p157 = pneg %p54
      %p158 = pneg %p83
      %p159 = pneg %p80
      %s160 = smul.u32 32, %s15
      %p161 = scmp.lt.s32.totalorder %s160, 63
      %s162 = scalar_select %p161, %s160, 63
      %s163 = smul.addr %s162, 8
      %s164 = scalar_lea.vmem %s2, %s163
      %p165 = pneg %p109
      %p166 = pneg %p106
      %p167 = scmp.lt.s32.totalorder %s15, 1
      %s168 = scalar_select %p167, %s15, 1
      %s169 = smul.addr %s168, 8
      %s170 = scalar_lea.vmem %s3, %s169
      %s171 = smul.u32 32, %s15
      %p172 = scmp.lt.s32.totalorder %s171, 63
      %s173 = scalar_select %p172, %s171, 63
      %s174 = smul.addr %s173, 2
      %s175 = smul.addr %s174, 4
      %s176 = scalar_lea.vmem %s0, %s175
      %s177 = smul.u32 32, %s15
      %s178 = smul.u32 32, %s15
      %p179 = scmp.lt.s32.totalorder %s178, 63
      %s180 = scalar_select %p179, %s178, 63
      %s181 = smul.addr %s180, 8
      %s182 = scalar_lea.vmem %s2, %s181
      %s183 = smul.u32 32, %s15
      %p184 = scmp.lt.s32.totalorder %s15, 1
      %s185 = scalar_select %p184, %s15, 1
      %s186 = smul.addr %s185, 8
      %s187 = scalar_lea.vmem %s3, %s186
      %v189 = vld [vmem:[%s176] sm:$0xff]
      %v190 = vld [vmem:[%s176 + $0x8] sm:$0xff]
      %v191 = vld [vmem:[%s176 + $0x10] sm:$0xff]
      %v192 = vld [vmem:[%s176 + $0x18] sm:$0xff]
      %v193 = vld [vmem:[%s176 + $0x20] sm:$0xff]
      %v194 = vld [vmem:[%s176 + $0x28] sm:$0xff]
      %v195 = vld [vmem:[%s176 + $0x30] sm:$0xff]
      %v196 = vld [vmem:[%s176 + $0x38] sm:$0xff]
      %v197 = vld [vmem:[%s176 + $0x40] sm:$0xff]
      %v198 = vld [vmem:[%s176 + $0x48] sm:$0xff]
      %v199 = vld [vmem:[%s176 + $0x50] sm:$0xff]
      %v200 = vld [vmem:[%s176 + $0x58] sm:$0xff]
      %v201 = vld [vmem:[%s176 + $0x60] sm:$0xff]
      %v202 = vld [vmem:[%s176 + $0x68] sm:$0xff]
      %v203 = vld [vmem:[%s176 + $0x70] sm:$0xff]
      %v204 = vld [vmem:[%s176 + $0x78] sm:$0xff]
      %v205 = vld [vmem:[%s176 + $0x80] sm:$0xff]
      %v206 = vld [vmem:[%s176 + $0x88] sm:$0xff]
      %v207 = vld [vmem:[%s176 + $0x90] sm:$0xff]
      %v208 = vld [vmem:[%s176 + $0x98] sm:$0xff]
      %v209 = vld [vmem:[%s176 + $0xa0] sm:$0xff]
      %v210 = vld [vmem:[%s176 + $0xa8] sm:$0xff]
      %v211 = vld [vmem:[%s176 + $0xb0] sm:$0xff]
      %v212 = vld [vmem:[%s176 + $0xb8] sm:$0xff]
      %v213 = vld [vmem:[%s176 + $0xc0] sm:$0xff]
      %v214 = vld [vmem:[%s176 + $0xc8] sm:$0xff]
      %v215 = vld [vmem:[%s176 + $0xd0] sm:$0xff]
      %v216 = vld [vmem:[%s176 + $0xd8] sm:$0xff]
      %v217 = vld [vmem:[%s176 + $0xe0] sm:$0xff]
      %v218 = vld [vmem:[%s176 + $0xe8] sm:$0xff]
      %v219 = vld [vmem:[%s176 + $0xf0] sm:$0xff]
      %v220 = vld [vmem:[%s176 + $0xf8] sm:$0xff]
      %v221 = vld [vmem:[%s1] sm:$0xf]
      %v222 = vld [vmem:[%s1 + $0x4] sm:$0xf]
      %v223 = vld [vmem:[%s1 + $0x8] sm:$0xf]
      %v224 = vld [vmem:[%s1 + $0xc] sm:$0xf]
      %v225 = vld [vmem:[%s1 + $0x10] sm:$0xf]
      %v226 = vld [vmem:[%s1 + $0x14] sm:$0xf]
      %v227 = vld [vmem:[%s1 + $0x18] sm:$0xf]
      %v228 = vld [vmem:[%s1 + $0x1c] sm:$0xf]
      %v229 = vld [vmem:[%s1 + $0x20] sm:$0xf]
      %v230 = vld [vmem:[%s1 + $0x24] sm:$0xf]
      %v231 = vld [vmem:[%s1 + $0x28] sm:$0xf]
      %v232 = vld [vmem:[%s1 + $0x2c] sm:$0xf]
      %v233 = vld [vmem:[%s1 + $0x30] sm:$0xf]
      %v234 = vld [vmem:[%s1 + $0x34] sm:$0xf]
      %v235 = vld [vmem:[%s1 + $0x38] sm:$0xf]
      %v236 = vld [vmem:[%s1 + $0x3c] sm:$0xf]
      %v237 = vld [vmem:[%s1 + $0x40] sm:$0xf]
      %v238 = vld [vmem:[%s1 + $0x44] sm:$0xf]
      %v271 = vunpack.c.l.b16 %v189
      %v272 = vunpack.c.h.b16 %v189
      %v273 = vunpack.c.l.b16 %v190
      %v274 = vunpack.c.h.b16 %v190
      %v275 = vunpack.c.l.b16 %v191
      %v276 = vunpack.c.h.b16 %v191
      %v277 = vunpack.c.l.b16 %v192
      %v278 = vunpack.c.h.b16 %v192
      %v279 = vunpack.c.l.b16 %v193
      %v280 = vunpack.c.h.b16 %v193
      %v281 = vunpack.c.l.b16 %v194
      %v282 = vunpack.c.h.b16 %v194
      %v283 = vunpack.c.l.b16 %v195
      %v284 = vunpack.c.h.b16 %v195
      %v285 = vunpack.c.l.b16 %v196
      %v286 = vunpack.c.h.b16 %v196
      %v287 = vunpack.c.l.b16 %v197
      %v288 = vunpack.c.h.b16 %v197
      %v289 = vunpack.c.l.b16 %v198
      %v290 = vunpack.c.h.b16 %v198
      %v291 = vunpack.c.l.b16 %v199
      %v292 = vunpack.c.h.b16 %v199
      %v293 = vunpack.c.l.b16 %v200
      %v294 = vunpack.c.h.b16 %v200
      %v295 = vunpack.c.l.b16 %v201
      %v296 = vunpack.c.h.b16 %v201
      %v297 = vunpack.c.l.b16 %v202
      %v298 = vunpack.c.h.b16 %v202
      %v299 = vunpack.c.l.b16 %v203
      %v300 = vunpack.c.h.b16 %v203
      %v301 = vunpack.c.l.b16 %v204
      %v302 = vunpack.c.h.b16 %v204
      %v303 = vunpack.c.l.b16 %v205
      %v304 = vunpack.c.h.b16 %v205
      %v305 = vunpack.c.l.b16 %v206
      %v306 = vunpack.c.h.b16 %v206
      %v307 = vunpack.c.l.b16 %v207
      %v308 = vunpack.c.h.b16 %v207
      %v309 = vunpack.c.l.b16 %v208
      %v310 = vunpack.c.h.b16 %v208
      %v311 = vunpack.c.l.b16 %v209
      %v312 = vunpack.c.h.b16 %v209
      %v313 = vunpack.c.l.b16 %v210
      %v314 = vunpack.c.h.b16 %v210
      %v315 = vunpack.c.l.b16 %v211
      %v316 = vunpack.c.h.b16 %v211
      %v317 = vunpack.c.l.b16 %v212
      %v318 = vunpack.c.h.b16 %v212
      %v319 = vunpack.c.l.b16 %v213
      %v320 = vunpack.c.h.b16 %v213
      %v321 = vunpack.c.l.b16 %v214
      %v322 = vunpack.c.h.b16 %v214
      %v323 = vunpack.c.l.b16 %v215
      %v324 = vunpack.c.h.b16 %v215
      %v325 = vunpack.c.l.b16 %v216
      %v326 = vunpack.c.h.b16 %v216
      %v327 = vunpack.c.l.b16 %v217
      %v328 = vunpack.c.h.b16 %v217
      %v329 = vunpack.c.l.b16 %v218
      %v330 = vunpack.c.h.b16 %v218
      %v331 = vunpack.c.l.b16 %v219
      %v332 = vunpack.c.h.b16 %v219
      %v333 = vunpack.c.l.b16 %v220
      %v334 = vunpack.c.h.b16 %v220
      %v335 = vpack.c.b16 %v273, %v271
      %v336 = vpack.c.b16 %v274, %v272
      %v337 = vpack.c.b16 %v277, %v275
      %v338 = vpack.c.b16 %v278, %v276
      %v339 = vpack.c.b16 %v281, %v279
      %v340 = vpack.c.b16 %v282, %v280
      %v341 = vpack.c.b16 %v285, %v283
      %v342 = vpack.c.b16 %v286, %v284
      %v343 = vpack.c.b16 %v289, %v287
      %v344 = vpack.c.b16 %v290, %v288
      %v345 = vpack.c.b16 %v293, %v291
      %v346 = vpack.c.b16 %v294, %v292
      %v347 = vpack.c.b16 %v297, %v295
      %v348 = vpack.c.b16 %v298, %v296
      %v349 = vpack.c.b16 %v301, %v299
      %v350 = vpack.c.b16 %v302, %v300
      %v351 = vpack.c.b16 %v305, %v303
      %v352 = vpack.c.b16 %v306, %v304
      %v353 = vpack.c.b16 %v309, %v307
      %v354 = vpack.c.b16 %v310, %v308
      %v355 = vpack.c.b16 %v313, %v311
      %v356 = vpack.c.b16 %v314, %v312
      %v357 = vpack.c.b16 %v317, %v315
      %v358 = vpack.c.b16 %v318, %v316
      %v359 = vpack.c.b16 %v321, %v319
      %v360 = vpack.c.b16 %v322, %v320
      %v361 = vpack.c.b16 %v325, %v323
      %v362 = vpack.c.b16 %v326, %v324
      %v363 = vpack.c.b16 %v329, %v327
      %v364 = vpack.c.b16 %v330, %v328
      %v365 = vpack.c.b16 %v333, %v331
      %v366 = vpack.c.b16 %v334, %v332
      %v401 = vunpack.c.l.b16 %v221
      %v402 = vunpack.c.l.b16 %v222
      %v403 = vunpack.c.l.b16 %v223
      %v404 = vunpack.c.l.b16 %v224
      %v405 = vunpack.c.l.b16 %v225
      %v406 = vunpack.c.l.b16 %v226
      %v407 = vunpack.c.l.b16 %v227
      %v408 = vunpack.c.l.b16 %v228
      %v409 = vunpack.c.l.b16 %v229
      %v410 = vunpack.c.l.b16 %v230
      %v411 = vunpack.c.l.b16 %v231
      %v412 = vunpack.c.l.b16 %v232
      %v413 = vunpack.c.l.b16 %v233
      %v414 = vunpack.c.l.b16 %v234
      %v415 = vunpack.c.l.b16 %v235
      %v416 = vunpack.c.l.b16 %v236
      %v417 = vunpack.c.l.b16 %v237
      %v418 = vunpack.c.l.b16 %v238
      %v419 = vpack.c.b16 %v402, %v401
      %v420 = vpack.c.b16 %v404, %v403
      %v421 = vpack.c.b16 %v406, %v405
      %v422 = vpack.c.b16 %v408, %v407
      %v423 = vpack.c.b16 %v410, %v409
      %v424 = vpack.c.b16 %v412, %v411
      %v425 = vpack.c.b16 %v414, %v413
      %v426 = vpack.c.b16 %v416, %v415
      %v427 = vpack.c.b16 %v418, %v417
      %vm437 = vcmask 130048
      %v439 = vsel %vm437, %v336, 0
      %v442 = vsel %vm437, %v338, 0
      %v445 = vsel %vm437, %v340, 0
      %v448 = vsel %vm437, %v342, 0
      %v451 = vsel %vm437, %v344, 0
      %v454 = vsel %vm437, %v346, 0
      %v457 = vsel %vm437, %v348, 0
      %v460 = vsel %vm437, %v350, 0
      %v463 = vsel %vm437, %v352, 0
      %v466 = vsel %vm437, %v354, 0
      %v469 = vsel %vm437, %v356, 0
      %v472 = vsel %vm437, %v358, 0
      %v475 = vsel %vm437, %v360, 0
      %v478 = vsel %vm437, %v362, 0
      %v481 = vsel %vm437, %v364, 0
      %v484 = vsel %vm437, %v366, 0
      %486 = vmatprep.subr.bf16.mxu0 0
      %487 = vmatpush1.bf16.msra.mxu0 %v419
      %488 = vmatprep.subr.bf16.mxu0 0
      %489 = vmatpush1.bf16.msra.mxu0 %v420
      %490 = vmatprep.subr.bf16.mxu0 0
      %491 = vmatpush1.bf16.msra.mxu0 %v421
      %492 = vmatprep.subr.bf16.mxu0 0
      %493 = vmatpush1.bf16.msra.mxu0 %v422
      %494 = vmatprep.subr.bf16.mxu0 0
      %495 = vmatpush1.bf16.msra.mxu0 %v423
      %496 = vmatprep.subr.bf16.mxu0 0
      %497 = vmatpush1.bf16.msra.mxu0 %v424
      %498 = vmatprep.subr.bf16.mxu0 0
      %499 = vmatpush1.bf16.msra.mxu0 %v425
      %500 = vmatprep.subr.bf16.mxu0 0
      %501 = vmatpush1.bf16.msra.mxu0 %v426
      %502 = vmatprep.subr.bf16.mxu0 0
      %503 = vmatpush1.bf16.msra.mxu0 %v427
      %504 = vmatprep.subr.bf16.mxu0 0
      %505 = vmatpush1.bf16.msra.mxu0 0
      %506 = vmatprep.subr.bf16.mxu0 0
      %507 = vmatpush1.bf16.msra.mxu0 0
      %508 = vmatprep.subr.bf16.mxu0 0
      %509 = vmatpush1.bf16.msra.mxu0 0
      %510 = vmatprep.subr.bf16.mxu0 0
      %511 = vmatpush1.bf16.msra.mxu0 0
      %512 = vmatprep.subr.bf16.mxu0 0
      %513 = vmatpush1.bf16.msra.mxu0 0
      %514 = vmatprep.subr.bf16.mxu0 0
      %515 = vmatpush1.bf16.msra.mxu0 0
      %516 = vmatprep.subr.bf16.mxu0 0
      %517 = vmatpush1.bf16.msra.mxu0 0
      %518 = vmatprep.mubr.bf16.mxu0 %v439
      %519 = vmatmul.mubr.bf16.gmra.mrb[0].mxu0 %v335
      %v520 = vpop.f32.mrb[0].mxu0
      %v521 = vadd.f32 0.0, %v520
      %v522 = vpop.f32.mrb[0].mxu0
      %v523 = vpop.f32.mrb[0].mxu0
      %v524 = vadd.f32 0.0, %v523
      %v525 = vpop.f32.mrb[0].mxu0
      %526 = vmatprep.mubr.bf16.mxu0 %v442
      %527 = vmatmul.mubr.bf16.gmra.mrb[0].mxu0 %v337
      %v528 = vpop.f32.mrb[0].mxu0
      %v529 = vadd.f32 0.0, %v528
      %v530 = vpop.f32.mrb[0].mxu0
      %v531 = vpop.f32.mrb[0].mxu0
      %v532 = vadd.f32 0.0, %v531
      %v533 = vpop.f32.mrb[0].mxu0
      %534 = vmatprep.mubr.bf16.mxu0 %v445
      %535 = vmatmul.mubr.bf16.gmra.mrb[0].mxu0 %v339
      %v536 = vpop.f32.mrb[0].mxu0
      %v537 = vadd.f32 0.0, %v536
      %v538 = vpop.f32.mrb[0].mxu0
      %v539 = vpop.f32.mrb[0].mxu0
      %v540 = vadd.f32 0.0, %v539
      %v541 = vpop.f32.mrb[0].mxu0
      %542 = vmatprep.mubr.bf16.mxu0 %v448
      %543 = vmatmul.mubr.bf16.gmra.mrb[0].mxu0 %v341
      %v544 = vpop.f32.mrb[0].mxu0
      %v545 = vadd.f32 0.0, %v544
      %v546 = vpop.f32.mrb[0].mxu0
      %v547 = vpop.f32.mrb[0].mxu0
      %v548 = vadd.f32 0.0, %v547
      %v549 = vpop.f32.mrb[0].mxu0
      %550 = vmatprep.mubr.bf16.mxu0 %v451
      %551 = vmatmul.mubr.bf16.gmra.mrb[0].mxu0 %v343
      %v552 = vpop.f32.mrb[0].mxu0
      %v553 = vadd.f32 0.0, %v552
      %v554 = vpop.f32.mrb[0].mxu0
      %v555 = vpop.f32.mrb[0].mxu0
      %v556 = vadd.f32 0.0, %v555
      %v557 = vpop.f32.mrb[0].mxu0
      %558 = vmatprep.mubr.bf16.mxu0 %v454
      %559 = vmatmul.mubr.bf16.gmra.mrb[0].mxu0 %v345
      %v560 = vpop.f32.mrb[0].mxu0
      %v561 = vadd.f32 0.0, %v560
      %v562 = vpop.f32.mrb[0].mxu0
      %v563 = vpop.f32.mrb[0].mxu0
      %v564 = vadd.f32 0.0, %v563
      %v565 = vpop.f32.mrb[0].mxu0
      %566 = vmatprep.mubr.bf16.mxu0 %v457
      %567 = vmatmul.mubr.bf16.gmra.mrb[0].mxu0 %v347
      %v568 = vpop.f32.mrb[0].mxu0
      %v569 = vadd.f32 0.0, %v568
      %v570 = vpop.f32.mrb[0].mxu0
      %v571 = vpop.f32.mrb[0].mxu0
      %v572 = vadd.f32 0.0, %v571
      %v573 = vpop.f32.mrb[0].mxu0
      %574 = vmatprep.mubr.bf16.mxu0 %v460
      %575 = vmatmul.mubr.bf16.gmra.mrb[0].mxu0 %v349
      %v576 = vpop.f32.mrb[0].mxu0
      %v577 = vadd.f32 0.0, %v576
      %v578 = vpop.f32.mrb[0].mxu0
      %v579 = vpop.f32.mrb[0].mxu0
      %v580 = vadd.f32 0.0, %v579
      %v581 = vpop.f32.mrb[0].mxu0
      %582 = vmatprep.mubr.bf16.mxu0 %v463
      %583 = vmatmul.mubr.bf16.gmra.mrb[0].mxu0 %v351
      %v584 = vpop.f32.mrb[0].mxu0
      %v585 = vadd.f32 0.0, %v584
      %v586 = vpop.f32.mrb[0].mxu0
      %v587 = vpop.f32.mrb[0].mxu0
      %v588 = vadd.f32 0.0, %v587
      %v589 = vpop.f32.mrb[0].mxu0
      %590 = vmatprep.mubr.bf16.mxu0 %v466
      %591 = vmatmul.mubr.bf16.gmra.mrb[0].mxu0 %v353
      %v592 = vpop.f32.mrb[0].mxu0
      %v593 = vadd.f32 0.0, %v592
      %v594 = vpop.f32.mrb[0].mxu0
      %v595 = vpop.f32.mrb[0].mxu0
      %v596 = vadd.f32 0.0, %v595
      %v597 = vpop.f32.mrb[0].mxu0
      %598 = vmatprep.mubr.bf16.mxu0 %v469
      %599 = vmatmul.mubr.bf16.gmra.mrb[0].mxu0 %v355
      %v600 = vpop.f32.mrb[0].mxu0
      %v601 = vadd.f32 0.0, %v600
      %v602 = vpop.f32.mrb[0].mxu0
      %v603 = vpop.f32.mrb[0].mxu0
      %v604 = vadd.f32 0.0, %v603
      %v605 = vpop.f32.mrb[0].mxu0
      %606 = vmatprep.mubr.bf16.mxu0 %v472
      %607 = vmatmul.mubr.bf16.gmra.mrb[0].mxu0 %v357
      %v608 = vpop.f32.mrb[0].mxu0
      %v609 = vadd.f32 0.0, %v608
      %v610 = vpop.f32.mrb[0].mxu0
      %v611 = vpop.f32.mrb[0].mxu0
      %v612 = vadd.f32 0.0, %v611
      %v613 = vpop.f32.mrb[0].mxu0
      %614 = vmatprep.mubr.bf16.mxu0 %v475
      %615 = vmatmul.mubr.bf16.gmra.mrb[0].mxu0 %v359
      %v616 = vpop.f32.mrb[0].mxu0
      %v617 = vadd.f32 0.0, %v616
      %v618 = vpop.f32.mrb[0].mxu0
      %v619 = vpop.f32.mrb[0].mxu0
      %v620 = vadd.f32 0.0, %v619
      %v621 = vpop.f32.mrb[0].mxu0
      %622 = vmatprep.mubr.bf16.mxu0 %v478
      %623 = vmatmul.mubr.bf16.gmra.mrb[0].mxu0 %v361
      %v624 = vpop.f32.mrb[0].mxu0
      %v625 = vadd.f32 0.0, %v624
      %v626 = vpop.f32.mrb[0].mxu0
      %v627 = vpop.f32.mrb[0].mxu0
      %v628 = vadd.f32 0.0, %v627
      %v629 = vpop.f32.mrb[0].mxu0
      %630 = vmatprep.mubr.bf16.mxu0 %v481
      %631 = vmatmul.mubr.bf16.gmra.mrb[0].mxu0 %v363
      %v632 = vpop.f32.mrb[0].mxu0
      %v633 = vadd.f32 0.0, %v632
      %v634 = vpop.f32.mrb[0].mxu0
      %v635 = vpop.f32.mrb[0].mxu0
      %v636 = vadd.f32 0.0, %v635
      %v637 = vpop.f32.mrb[0].mxu0
      %638 = vmatprep.mubr.bf16.mxu0 %v484
      %639 = vmatmul.mubr.bf16.gmra.mrb[0].mxu0 %v365
      %v640 = vpop.f32.mrb[0].mxu0
      %v641 = vadd.f32 0.0, %v640
      %v642 = vpop.f32.mrb[0].mxu0
      %v643 = vpop.f32.mrb[0].mxu0
      %v644 = vadd.f32 0.0, %v643
      %v645 = vpop.f32.mrb[0].mxu0
      %646 = vdwg.mxu0
      %647 = vst [vmem:[%s182] sm:$0xff] %v521
      %648 = vst [vmem:[%s182 + $0x8] sm:$0xff] %v524
      %649 = vst [vmem:[%s182 + $0x10] sm:$0xff] %v529
      %650 = vst [vmem:[%s182 + $0x18] sm:$0xff] %v532
      %651 = vst [vmem:[%s182 + $0x20] sm:$0xff] %v537
      %652 = vst [vmem:[%s182 + $0x28] sm:$0xff] %v540
      %653 = vst [vmem:[%s182 + $0x30] sm:$0xff] %v545
      %654 = vst [vmem:[%s182 + $0x38] sm:$0xff] %v548
      %655 = vst [vmem:[%s182 + $0x40] sm:$0xff] %v553
      %656 = vst [vmem:[%s182 + $0x48] sm:$0xff] %v556
      %657 = vst [vmem:[%s182 + $0x50] sm:$0xff] %v561
      %658 = vst [vmem:[%s182 + $0x58] sm:$0xff] %v564
      %659 = vst [vmem:[%s182 + $0x60] sm:$0xff] %v569
      %660 = vst [vmem:[%s182 + $0x68] sm:$0xff] %v572
      %661 = vst [vmem:[%s182 + $0x70] sm:$0xff] %v577
      %662 = vst [vmem:[%s182 + $0x78] sm:$0xff] %v580
      %663 = vst [vmem:[%s182 + $0x80] sm:$0xff] %v585
      %664 = vst [vmem:[%s182 + $0x88] sm:$0xff] %v588
      %665 = vst [vmem:[%s182 + $0x90] sm:$0xff] %v593
      %666 = vst [vmem:[%s182 + $0x98] sm:$0xff] %v596
      %667 = vst [vmem:[%s182 + $0xa0] sm:$0xff] %v601
      %668 = vst [vmem:[%s182 + $0xa8] sm:$0xff] %v604
      %669 = vst [vmem:[%s182 + $0xb0] sm:$0xff] %v609
      %670 = vst [vmem:[%s182 + $0xb8] sm:$0xff] %v612
      %671 = vst [vmem:[%s182 + $0xc0] sm:$0xff] %v617
      %672 = vst [vmem:[%s182 + $0xc8] sm:$0xff] %v620
      %673 = vst [vmem:[%s182 + $0xd0] sm:$0xff] %v625
      %674 = vst [vmem:[%s182 + $0xd8] sm:$0xff] %v628
      %675 = vst [vmem:[%s182 + $0xe0] sm:$0xff] %v633
      %676 = vst [vmem:[%s182 + $0xe8] sm:$0xff] %v636
      %677 = vst [vmem:[%s182 + $0xf0] sm:$0xff] %v641
      %678 = vst [vmem:[%s182 + $0xf8] sm:$0xff] %v644
      %v679 = vadd.f32 %v521, %v524
      %v680 = vadd.f32 %v679, %v529
      %v681 = vadd.f32 %v680, %v532
      %v682 = vadd.f32 %v681, %v537
      %v683 = vadd.f32 %v682, %v540
      %v684 = vadd.f32 %v683, %v545
      %v685 = vadd.f32 %v684, %v548
      %v686 = vadd.f32 %v685, %v553
      %v687 = vadd.f32 %v686, %v556
      %v688 = vadd.f32 %v687, %v561
      %v689 = vadd.f32 %v688, %v564
      %v690 = vadd.f32 %v689, %v569
      %v691 = vadd.f32 %v690, %v572
      %v692 = vadd.f32 %v691, %v577
      %v693 = vadd.f32 %v692, %v580
      %v694 = vadd.f32 %v693, %v585
      %v695 = vadd.f32 %v694, %v588
      %v696 = vadd.f32 %v695, %v593
      %v697 = vadd.f32 %v696, %v596
      %v698 = vadd.f32 %v697, %v601
      %v699 = vadd.f32 %v698, %v604
      %v700 = vadd.f32 %v699, %v609
      %v701 = vadd.f32 %v700, %v612
      %v702 = vadd.f32 %v701, %v617
      %v703 = vadd.f32 %v702, %v620
      %v704 = vadd.f32 %v703, %v625
      %v705 = vadd.f32 %v704, %v628
      %v706 = vadd.f32 %v705, %v633
      %v707 = vadd.f32 %v706, %v636
      %v708 = vadd.f32 %v707, %v641
      %v709 = vadd.f32 %v708, %v644
      %v710 = vrot.slane %v709, 4
      %v711 = vadd.f32 %v709, %v710
      %v712 = vrot.slane %v711, 2
      %v713 = vadd.f32 %v711, %v712
      %v714 = vrot.slane %v713, 1
      %v715 = vadd.f32 %v713, %v714
      %v716 = vmul.f32 %v521, %v521
      %v717 = vmul.f32 %v524, %v524
      %v718 = vmul.f32 %v529, %v529
      %v719 = vmul.f32 %v532, %v532
      %v720 = vmul.f32 %v537, %v537
      %v721 = vmul.f32 %v540, %v540
      %v722 = vmul.f32 %v545, %v545
      %v723 = vmul.f32 %v548, %v548
      %v724 = vmul.f32 %v553, %v553
      %v725 = vmul.f32 %v556, %v556
      %v726 = vmul.f32 %v561, %v561
      %v727 = vmul.f32 %v564, %v564
      %v728 = vmul.f32 %v569, %v569
      %v729 = vmul.f32 %v572, %v572
      %v730 = vmul.f32 %v577, %v577
      %v731 = vmul.f32 %v580, %v580
      %v732 = vmul.f32 %v585, %v585
      %v733 = vmul.f32 %v588, %v588
      %v734 = vmul.f32 %v593, %v593
      %v735 = vmul.f32 %v596, %v596
      %v736 = vmul.f32 %v601, %v601
      %v737 = vmul.f32 %v604, %v604
      %v738 = vmul.f32 %v609, %v609
      %v739 = vmul.f32 %v612, %v612
      %v740 = vmul.f32 %v617, %v617
      %v741 = vmul.f32 %v620, %v620
      %v742 = vmul.f32 %v625, %v625
      %v743 = vmul.f32 %v628, %v628
      %v744 = vmul.f32 %v633, %v633
      %v745 = vmul.f32 %v636, %v636
      %v746 = vmul.f32 %v641, %v641
      %v747 = vmul.f32 %v644, %v644
      %v748 = vadd.f32 %v716, %v717
      %v749 = vadd.f32 %v748, %v718
      %v750 = vadd.f32 %v749, %v719
      %v751 = vadd.f32 %v750, %v720
      %v752 = vadd.f32 %v751, %v721
      %v753 = vadd.f32 %v752, %v722
      %v754 = vadd.f32 %v753, %v723
      %v755 = vadd.f32 %v754, %v724
      %v756 = vadd.f32 %v755, %v725
      %v757 = vadd.f32 %v756, %v726
      %v758 = vadd.f32 %v757, %v727
      %v759 = vadd.f32 %v758, %v728
      %v760 = vadd.f32 %v759, %v729
      %v761 = vadd.f32 %v760, %v730
      %v762 = vadd.f32 %v761, %v731
      %v763 = vadd.f32 %v762, %v732
      %v764 = vadd.f32 %v763, %v733
      %v765 = vadd.f32 %v764, %v734
      %v766 = vadd.f32 %v765, %v735
      %v767 = vadd.f32 %v766, %v736
      %v768 = vadd.f32 %v767, %v737
      %v769 = vadd.f32 %v768, %v738
      %v770 = vadd.f32 %v769, %v739
      %v771 = vadd.f32 %v770, %v740
      %v772 = vadd.f32 %v771, %v741
      %v773 = vadd.f32 %v772, %v742
      %v774 = vadd.f32 %v773, %v743
      %v775 = vadd.f32 %v774, %v744
      %v776 = vadd.f32 %v775, %v745
      %v777 = vadd.f32 %v776, %v746
      %v778 = vadd.f32 %v777, %v747
      %v779 = vrot.slane %v778, 4
      %v780 = vadd.f32 %v778, %v779
      %v781 = vrot.slane %v780, 2
      %v782 = vadd.f32 %v780, %v781
      %v783 = vrot.slane %v782, 1
      %v784 = vadd.f32 %v782, %v783
      %vm785 = vcmask 1040384
      %v786 = vsel %vm785, %v715, %v784
      %vm787 = vcmask 1041408
      %v788 = vsel %vm787, %v786, 0.0
      %789 = vst [vmem:[%s187] sm:$0xff] %v788
      %s790 = smul.u32 32, %s15
      %p791 = scmp.lt.s32.totalorder %s790, 63
      %s792 = scalar_select %p791, %s790, 63
      %s793 = smul.addr %s792, 8
      %s794 = scalar_lea.vmem %s2, %s793
      %p795 = scmp.lt.s32.totalorder %s15, 1
      %s796 = scalar_select %p795, %s15, 1
      %s797 = smul.addr %s796, 8
      %s798 = scalar_lea.vmem %s3, %s797
      // Predicated region
      $region29: #{decoder_block_forward.6} parent=27 // pred_check
        %p799 = pneg %p80
      $region30: #{decoder_block_forward.6} parent=27 // pred_check_branch
        %801 = sbr.rel (%p799) target = $region32
      $region31: #{decoder_block_forward.6} parent=27 // pred_region
        %s802 = smul.u32 32, %s15
      $region32: #{decoder_block_forward.6} parent=27 // pred_fallthru
        _
      // Predicated region
      $region33: #{decoder_block_forward.6} parent=27 // pred_check
        %p803 = pneg %p106
      $region34: #{decoder_block_forward.6} parent=27 // pred_check_branch
        %805 = sbr.rel (%p803) target = $region36
      $region35: #{decoder_block_forward.6} parent=27 // pred_region
        _
      $region36: #{decoder_block_forward.6} parent=27 // pred_fallthru
        _
    $region28: #{decoder_block_forward.6} parent=5 // pred_fallthru
      _
    %p806 = scmp.le.s32.totalorder 2, %s10
    // Predicated region
    $region37: #{decoder_block_forward.6} parent=5 // pred_check
      %p807 = pneg %p806
    $region38: #{decoder_block_forward.6} parent=5 // pred_check_branch
      %809 = sbr.rel (%p807) target = $region40
    $region39: #{decoder_block_forward.6} parent=5 // pred_region
      %s810 = ssub.s32 %s10, 2
      // Predicated region
      $region41: #{decoder_block_forward.6} parent=39 // pred_check
        %p811 = pneg %p86
      $region42: #{decoder_block_forward.6} parent=39 // pred_check_branch
        %813 = sbr.rel (%p811) target = $region44
      $region43: #{decoder_block_forward.6} parent=39 // pred_region
        %s814 = smul.u32 32, %s16
        %p815 = scmp.lt.s32.totalorder %s814, 63
        %s816 = scalar_select %p815, %s814, 63
        %s817 = smul.addr %s816, 8
        %s818 = scalar_lea.vmem %s2, %s817
      $region44: #{decoder_block_forward.6} parent=39 // pred_fallthru
        _
      // Predicated region
      $region45: #{decoder_block_forward.6} parent=39 // pred_check
        %p819 = pneg %p112
      $region46: #{decoder_block_forward.6} parent=39 // pred_check_branch
        %821 = sbr.rel (%p819) target = $region48
      $region47: #{decoder_block_forward.6} parent=39 // pred_region
        %p822 = scmp.lt.s32.totalorder %s16, 1
        %s823 = scalar_select %p822, %s16, 1
        %s824 = smul.addr %s823, 8
        %s825 = scalar_lea.vmem %s3, %s824
      $region48: #{decoder_block_forward.6} parent=39 // pred_fallthru
        _
    $region40: #{decoder_block_forward.6} parent=5 // pred_fallthru
      _
  $region6: #{decoder_block_forward.6} parent=0 // loop_footer
    %s14 = sadd.s32 1, %s10
  $region7: #{decoder_block_forward.6} parent=0 // loop_footer_branch
    %9 = sbr.rel target = $region3
  $region8: #{decoder_block_forward.6} parent=0 // loop_exit
    _

// kernel: decoder_block_forward.7
$region0: #{decoder_block_forward.7}
  #allocation0 [shape = 'u32[]', space=smem, size = 0x4, offset = 0x4, fixed_abs, tag = 'smem constant byte address 0x4 - core index']
  #allocation1 [shape = 'u32[144,128]{1,0:T(1,128)}', space=vmem, size = 0x12000, scoped, tag = 'internal scratch']
  %s0 = inlined_call_operand.vmem [shape: f32[512,128], index: 0, kind: input, shape index: {}]
  %s1 = inlined_call_operand.vmem [shape: f32[1,128], index: 1, kind: input, shape index: {}]
  %s2 = inlined_call_operand.vmem [shape: f32[1,128], index: 2, kind: input, shape index: {}]
  %s3 = inlined_call_operand.vmem [shape: bf16[512,128], index: 3, kind: output, shape index: {}]
  %s4 = sld [smem:[#allocation0]]
  $region45: #{decoder_block_forward.7} parent=0
    _
  %s6 = ssub.s32 1, %s4
  %s7 = scalar_select 0, %s6, %s4
  loop: start=0, step=1, limit=4
  $region2: #{decoder_block_forward.7} parent=0 // loop_pre_header
    _
  $region3: #{decoder_block_forward.7} parent=0 // loop_header
    %s9 = sphi 0, %s13
    %p10 = scmp.ge.s32.totalorder %s9, 4
    %s19 = sphi 0, %s21
    %s22 = sphi 0, %s19
    %s23 = sphi 0, %s22
    %s39 = sphi 0, %s23
    %s43 = sphi 0, %s43
    %s45 = sphi 0, %s43
    %s46 = sphi 0, %s45
    %s60 = sphi 0, %s46
    %s64 = sphi 0, %s64
    %s66 = sphi 0, %s64
    %s67 = sphi 0, %s66
    %s81 = sphi 0, %s67
    %s87 = sphi 0, %s89
    %s90 = sphi 0, %s87
    %s91 = sphi 0, %s90
    %s107 = sphi 0, %s91
  $region4: #{decoder_block_forward.7} parent=0 // loop_header_branch
    %12 = sbr.rel (%p10) target = $region8
  $region5: #{decoder_block_forward.7} parent=0 // loop_body
    %s14 = ssub.s32 %s9, 1
    %s15 = ssub.s32 %s9, 2
    %s16 = sadd.s32 %s9, 1
    %s17 = ssub.s32 %s9, %s16
    %p18 = scmp.eq.s32.totalorder %s17, 0
    %s20 = sadd.s32 %s19, 1
    %s21 = scalar_select %p18, %s19, %s20
    %p24 = pneg %p18
    %p25 = scmp.eq.s32.totalorder %s9, 1
    %p26 = por %p24, %p25
    %p27 = scmp.ne.s32.totalorder %s19, %s22
    %p28 = scmp.eq.s32.totalorder %s9, 0
    %p29 = por %p27, %p28
    %p30 = scmp.ne.s32.totalorder %s19, %s22
    %p31 = scmp.eq.s32.totalorder %s14, 1
    %p32 = por %p30, %p31
    %p33 = scmp.ne.s32.totalorder %s22, %s23
    %p34 = scmp.eq.s32.totalorder %s14, 0
    %p35 = por %p33, %p34
    %p36 = scmp.ne.s32.totalorder %s22, %s23
    %p37 = scmp.eq.s32.totalorder %s15, 1
    %p38 = por %p36, %p37
    %p40 = scmp.ne.s32.totalorder %s23, %s39
    %p41 = scmp.eq.s32.totalorder %s15, 0
    %p42 = por %p40, %p41
    %s44 = sadd.s32 %s43, 1
    %p47 = scmp.eq.s32.totalorder %s9, 1
    %p48 = scmp.ne.s32.totalorder %s43, %s45
    %p49 = scmp.eq.s32.totalorder %s9, 0
    %p50 = por %p48, %p49
    %p51 = scmp.ne.s32.totalorder %s43, %s45
    %p52 = scmp.eq.s32.totalorder %s14, 1
    %p53 = por %p51, %p52
    %p54 = scmp.ne.s32.totalorder %s45, %s46
    %p55 = scmp.eq.s32.totalorder %s14, 0
    %p56 = por %p54, %p55
    %p57 = scmp.ne.s32.totalorder %s45, %s46
    %p58 = scmp.eq.s32.totalorder %s15, 1
    %p59 = por %p57, %p58
    %p61 = scmp.ne.s32.totalorder %s46, %s60
    %p62 = scmp.eq.s32.totalorder %s15, 0
    %p63 = por %p61, %p62
    %s65 = sadd.s32 %s64, 1
    %p68 = scmp.eq.s32.totalorder %s9, 1
    %p69 = scmp.ne.s32.totalorder %s64, %s66
    %p70 = scmp.eq.s32.totalorder %s9, 0
    %p71 = por %p69, %p70
    %p72 = scmp.ne.s32.totalorder %s64, %s66
    %p73 = scmp.eq.s32.totalorder %s14, 1
    %p74 = por %p72, %p73
    %p75 = scmp.ne.s32.totalorder %s66, %s67
    %p76 = scmp.eq.s32.totalorder %s14, 0
    %p77 = por %p75, %p76
    %p78 = scmp.ne.s32.totalorder %s66, %s67
    %p79 = scmp.eq.s32.totalorder %s15, 1
    %p80 = por %p78, %p79
    %p82 = scmp.ne.s32.totalorder %s67, %s81
    %p83 = scmp.eq.s32.totalorder %s15, 0
    %p84 = por %p82, %p83
    %s85 = ssub.s32 %s9, %s16
    %p86 = scmp.eq.s32.totalorder %s85, 0
    %s88 = sadd.s32 %s87, 1
    %s89 = scalar_select %p86, %s87, %s88
    %p92 = pneg %p86
    %p93 = scmp.eq.s32.totalorder %s9, 1
    %p94 = por %p92, %p93
    %p95 = scmp.ne.s32.totalorder %s87, %s90
    %p96 = scmp.eq.s32.totalorder %s9, 0
    %p97 = por %p95, %p96
    %p98 = scmp.ne.s32.totalorder %s87, %s90
    %p99 = scmp.eq.s32.totalorder %s14, 1
    %p100 = por %p98, %p99
    %p101 = scmp.ne.s32.totalorder %s90, %s91
    %p102 = scmp.eq.s32.totalorder %s14, 0
    %p103 = por %p101, %p102
    %p104 = scmp.ne.s32.totalorder %s90, %s91
    %p105 = scmp.eq.s32.totalorder %s15, 1
    %p106 = por %p104, %p105
    %p108 = scmp.ne.s32.totalorder %s91, %s107
    %p109 = scmp.eq.s32.totalorder %s15, 0
    %p110 = por %p108, %p109
    %p111 = scmp.le.s32.totalorder 1, %s9
    %p112 = scmp.lt.s32.totalorder %s9, 3
    %p113 = pnand %p111, %p112
    %p114 = pneg %p113
    // Predicated region
    $region9: #{decoder_block_forward.7} parent=5 // pred_check
      _
    $region10: #{decoder_block_forward.7} parent=5 // pred_check_branch
      %116 = sbr.rel (%p113) target = $region12
    $region11: #{decoder_block_forward.7} parent=5 // pred_region
      %s117 = ssub.s32 %s9, 1
      // Predicated region
      $region13: #{decoder_block_forward.7} parent=11 // pred_check
        %p118 = pneg %p56
      $region14: #{decoder_block_forward.7} parent=11 // pred_check_branch
        %120 = sbr.rel (%p118) target = $region16
      $region15: #{decoder_block_forward.7} parent=11 // pred_region
        _
      $region16: #{decoder_block_forward.7} parent=11 // pred_fallthru
        _
      // Predicated region
      $region17: #{decoder_block_forward.7} parent=11 // pred_check
        %p121 = pneg %p77
      $region18: #{decoder_block_forward.7} parent=11 // pred_check_branch
        %123 = sbr.rel (%p121) target = $region20
      $region19: #{decoder_block_forward.7} parent=11 // pred_region
        _
      $region20: #{decoder_block_forward.7} parent=11 // pred_fallthru
        _
    $region12: #{decoder_block_forward.7} parent=5 // pred_fallthru
      _
    %p124 = scmp.lt.s32.totalorder %s9, 2
    // Predicated region
    $region21: #{decoder_block_forward.7} parent=5 // pred_check
      %p125 = pneg %p124
    $region22: #{decoder_block_forward.7} parent=5 // pred_check_branch
      %127 = sbr.rel (%p125) target = $region24
    $region23: #{decoder_block_forward.7} parent=5 // pred_region
      // Predicated region
      $region25: #{decoder_block_forward.7} parent=23 // pred_check
        %p128 = pneg %p29
      $region26: #{decoder_block_forward.7} parent=23 // pred_check_branch
        %130 = sbr.rel (%p128) target = $region28
      $region27: #{decoder_block_forward.7} parent=23 // pred_region
        %s131 = smul.u32 32, %s9
        %p132 = scmp.lt.s32.totalorder %s131, 63
        %s133 = scalar_select %p132, %s131, 63
        %s134 = smul.addr %s133, 8
        %s135 = scalar_lea.vmem %s0, %s134
        %s136 = smul.u32 32, %s9
      $region28: #{decoder_block_forward.7} parent=23 // pred_fallthru
        _
    $region24: #{decoder_block_forward.7} parent=5 // pred_fallthru
      _
    %p137 = scmp.le.s32.totalorder 1, %s9
    %p138 = scmp.lt.s32.totalorder %s9, 3
    %p139 = pnand %p137, %p138
    %p140 = pneg %p139
    // Predicated region
    $region29: #{decoder_block_forward.7} parent=5 // pred_check
      _
    $region30: #{decoder_block_forward.7} parent=5 // pred_check_branch
      %142 = sbr.rel (%p139) target = $region32
    $region31: #{decoder_block_forward.7} parent=5 // pred_region
      %s143 = ssub.s32 %s9, 1
      %s144 = smul.u32 32, %s14
      %p145 = scmp.lt.s32.totalorder %s144, 63
      %s146 = scalar_select %p145, %s144, 63
      %s147 = smul.addr %s146, 8
      %s148 = scalar_lea.vmem %s0, %s147
      %p149 = pneg %p35
      %p150 = pneg %p32
      %p151 = pneg %p56
      %p152 = pneg %p53
      %p153 = pneg %p77
      %p154 = pneg %p74
      %p155 = pneg %p103
      %p156 = pneg %p100
      %s157 = smul.u32 32, %s14
      %p158 = scmp.lt.s32.totalorder %s157, 63
      %s159 = scalar_select %p158, %s157, 63
      %s160 = smul.addr %s159, 4
      %s161 = scalar_lea.vmem %s3, %s160
      %s162 = smul.u32 32, %s14
      %p163 = scmp.lt.s32.totalorder %s162, 63
      %s164 = scalar_select %p163, %s162, 63
      %s165 = smul.addr %s164, 8
      %s166 = scalar_lea.vmem %s0, %s165
      %s167 = smul.u32 32, %s14
      %s168 = smul.u32 32, %s14
      %p169 = scmp.lt.s32.totalorder %s168, 63
      %s170 = scalar_select %p169, %s168, 63
      %s171 = smul.addr %s170, 4
      %s172 = scalar_lea.vmem %s3, %s171
      %s173 = smul.u32 32, %s14
      %v174 = vld [vmem:[%s166] sm:$0xff]
      %v175 = vld [vmem:[%s166 + $0x8] sm:$0xff]
      %v176 = vld [vmem:[%s166 + $0x10] sm:$0xff]
      %v177 = vld [vmem:[%s166 + $0x18] sm:$0xff]
      %v178 = vld [vmem:[%s166 + $0x20] sm:$0xff]
      %v179 = vld [vmem:[%s166 + $0x28] sm:$0xff]
      %v180 = vld [vmem:[%s166 + $0x30] sm:$0xff]
      %v181 = vld [vmem:[%s166 + $0x38] sm:$0xff]
      %v182 = vld [vmem:[%s166 + $0x40] sm:$0xff]
      %v183 = vld [vmem:[%s166 + $0x48] sm:$0xff]
      %v184 = vld [vmem:[%s166 + $0x50] sm:$0xff]
      %v185 = vld [vmem:[%s166 + $0x58] sm:$0xff]
      %v186 = vld [vmem:[%s166 + $0x60] sm:$0xff]
      %v187 = vld [vmem:[%s166 + $0x68] sm:$0xff]
      %v188 = vld [vmem:[%s166 + $0x70] sm:$0xff]
      %v189 = vld [vmem:[%s166 + $0x78] sm:$0xff]
      %v190 = vld [vmem:[%s166 + $0x80] sm:$0xff]
      %v191 = vld [vmem:[%s166 + $0x88] sm:$0xff]
      %v192 = vld [vmem:[%s166 + $0x90] sm:$0xff]
      %v193 = vld [vmem:[%s166 + $0x98] sm:$0xff]
      %v194 = vld [vmem:[%s166 + $0xa0] sm:$0xff]
      %v195 = vld [vmem:[%s166 + $0xa8] sm:$0xff]
      %v196 = vld [vmem:[%s166 + $0xb0] sm:$0xff]
      %v197 = vld [vmem:[%s166 + $0xb8] sm:$0xff]
      %v198 = vld [vmem:[%s166 + $0xc0] sm:$0xff]
      %v199 = vld [vmem:[%s166 + $0xc8] sm:$0xff]
      %v200 = vld [vmem:[%s166 + $0xd0] sm:$0xff]
      %v201 = vld [vmem:[%s166 + $0xd8] sm:$0xff]
      %v202 = vld [vmem:[%s166 + $0xe0] sm:$0xff]
      %v203 = vld [vmem:[%s166 + $0xe8] sm:$0xff]
      %v204 = vld [vmem:[%s166 + $0xf0] sm:$0xff]
      %v205 = vld [vmem:[%s166 + $0xf8] sm:$0xff]
      %v206 = vld [vmem:[%s1] sm:$0x1]
      %v208 = vlaneseq
      %v209 = vshrl.u32 %v208, 7
      %v210 = vsub.s32 0, %v209
      %v211 = vrot.slane %v206, %v210
      %v213 = vmul.f32 %v174, %v211
      %v214 = vmul.f32 %v175, %v211
      %v215 = vmul.f32 %v176, %v211
      %v216 = vmul.f32 %v177, %v211
      %v217 = vmul.f32 %v178, %v211
      %v218 = vmul.f32 %v179, %v211
      %v219 = vmul.f32 %v180, %v211
      %v220 = vmul.f32 %v181, %v211
      %v221 = vmul.f32 %v182, %v211
      %v222 = vmul.f32 %v183, %v211
      %v223 = vmul.f32 %v184, %v211
      %v224 = vmul.f32 %v185, %v211
      %v225 = vmul.f32 %v186, %v211
      %v226 = vmul.f32 %v187, %v211
      %v227 = vmul.f32 %v188, %v211
      %v228 = vmul.f32 %v189, %v211
      %v229 = vmul.f32 %v190, %v211
      %v230 = vmul.f32 %v191, %v211
      %v231 = vmul.f32 %v192, %v211
      %v232 = vmul.f32 %v193, %v211
      %v233 = vmul.f32 %v194, %v211
      %v234 = vmul.f32 %v195, %v211
      %v235 = vmul.f32 %v196, %v211
      %v236 = vmul.f32 %v197, %v211
      %v237 = vmul.f32 %v198, %v211
      %v238 = vmul.f32 %v199, %v211
      %v239 = vmul.f32 %v200, %v211
      %v240 = vmul.f32 %v201, %v211
      %v241 = vmul.f32 %v202, %v211
      %v242 = vmul.f32 %v203, %v211
      %v243 = vmul.f32 %v204, %v211
      %v244 = vmul.f32 %v205, %v211
      %v245 = vld [vmem:[%s2] sm:$0x1]
      %v247 = vlaneseq
      %v248 = vshrl.u32 %v247, 7
      %v249 = vsub.s32 0, %v248
      %v250 = vrot.slane %v245, %v249
      %v252 = vadd.f32 %v213, %v250
      %v253 = vadd.f32 %v214, %v250
      %v254 = vadd.f32 %v215, %v250
      %v255 = vadd.f32 %v216, %v250
      %v256 = vadd.f32 %v217, %v250
      %v257 = vadd.f32 %v218, %v250
      %v258 = vadd.f32 %v219, %v250
      %v259 = vadd.f32 %v220, %v250
      %v260 = vadd.f32 %v221, %v250
      %v261 = vadd.f32 %v222, %v250
      %v262 = vadd.f32 %v223, %v250
      %v263 = vadd.f32 %v224, %v250
      %v264 = vadd.f32 %v225, %v250
      %v265 = vadd.f32 %v226, %v250
      %v266 = vadd.f32 %v227, %v250
      %v267 = vadd.f32 %v228, %v250
      %v268 = vadd.f32 %v229, %v250
      %v269 = vadd.f32 %v230, %v250
      %v270 = vadd.f32 %v231, %v250
      %v271 = vadd.f32 %v232, %v250
      %v272 = vadd.f32 %v233, %v250
      %v273 = vadd.f32 %v234, %v250
      %v274 = vadd.f32 %v235, %v250
      %v275 = vadd.f32 %v236, %v250
      %v276 = vadd.f32 %v237, %v250
      %v277 = vadd.f32 %v238, %v250
      %v278 = vadd.f32 %v239, %v250
      %v279 = vadd.f32 %v240, %v250
      %v280 = vadd.f32 %v241, %v250
      %v281 = vadd.f32 %v242, %v250
      %v282 = vadd.f32 %v243, %v250
      %v283 = vadd.f32 %v244, %v250
      %v284 = vmax.f32 %v252, 0.0
      %v285 = vmax.f32 %v253, 0.0
      %v286 = vmax.f32 %v254, 0.0
      %v287 = vmax.f32 %v255, 0.0
      %v288 = vmax.f32 %v256, 0.0
      %v289 = vmax.f32 %v257, 0.0
      %v290 = vmax.f32 %v258, 0.0
      %v291 = vmax.f32 %v259, 0.0
      %v292 = vmax.f32 %v260, 0.0
      %v293 = vmax.f32 %v261, 0.0
      %v294 = vmax.f32 %v262, 0.0
      %v295 = vmax.f32 %v263, 0.0
      %v296 = vmax.f32 %v264, 0.0
      %v297 = vmax.f32 %v265, 0.0
      %v298 = vmax.f32 %v266, 0.0
      %v299 = vmax.f32 %v267, 0.0
      %v300 = vmax.f32 %v268, 0.0
      %v301 = vmax.f32 %v269, 0.0
      %v302 = vmax.f32 %v270, 0.0
      %v303 = vmax.f32 %v271, 0.0
      %v304 = vmax.f32 %v272, 0.0
      %v305 = vmax.f32 %v273, 0.0
      %v306 = vmax.f32 %v274, 0.0
      %v307 = vmax.f32 %v275, 0.0
      %v308 = vmax.f32 %v276, 0.0
      %v309 = vmax.f32 %v277, 0.0
      %v310 = vmax.f32 %v278, 0.0
      %v311 = vmax.f32 %v279, 0.0
      %v312 = vmax.f32 %v280, 0.0
      %v313 = vmax.f32 %v281, 0.0
      %v314 = vmax.f32 %v282, 0.0
      %v315 = vmax.f32 %v283, 0.0
      %v316 = vpack.c.bf16 %v285, %v284
      %v317 = vpack.c.bf16 %v287, %v286
      %v318 = vpack.c.bf16 %v289, %v288
      %v319 = vpack.c.bf16 %v291, %v290
      %v320 = vpack.c.bf16 %v293, %v292
      %v321 = vpack.c.bf16 %v295, %v294
      %v322 = vpack.c.bf16 %v297, %v296
      %v323 = vpack.c.bf16 %v299, %v298
      %v324 = vpack.c.bf16 %v301, %v300
      %v325 = vpack.c.bf16 %v303, %v302
      %v326 = vpack.c.bf16 %v305, %v304
      %v327 = vpack.c.bf16 %v307, %v306
      %v328 = vpack.c.bf16 %v309, %v308
      %v329 = vpack.c.bf16 %v311, %v310
      %v330 = vpack.c.bf16 %v313, %v312
      %v331 = vpack.c.bf16 %v315, %v314
      %v348 = vunpack.c.l.b16 %v316
      %v349 = vunpack.c.h.b16 %v316
      %v350 = vunpack.c.l.b16 %v317
      %v351 = vunpack.c.h.b16 %v317
      %v352 = vunpack.c.l.b16 %v318
      %v353 = vunpack.c.h.b16 %v318
      %v354 = vunpack.c.l.b16 %v319
      %v355 = vunpack.c.h.b16 %v319
      %v356 = vunpack.c.l.b16 %v320
      %v357 = vunpack.c.h.b16 %v320
      %v358 = vunpack.c.l.b16 %v321
      %v359 = vunpack.c.h.b16 %v321
      %v360 = vunpack.c.l.b16 %v322
      %v361 = vunpack.c.h.b16 %v322
      %v362 = vunpack.c.l.b16 %v323
      %v363 = vunpack.c.h.b16 %v323
      %v364 = vunpack.c.l.b16 %v324
      %v365 = vunpack.c.h.b16 %v324
      %v366 = vunpack.c.l.b16 %v325
      %v367 = vunpack.c.h.b16 %v325
      %v368 = vunpack.c.l.b16 %v326
      %v369 = vunpack.c.h.b16 %v326
      %v370 = vunpack.c.l.b16 %v327
      %v371 = vunpack.c.h.b16 %v327
      %v372 = vunpack.c.l.b16 %v328
      %v373 = vunpack.c.h.b16 %v328
      %v374 = vunpack.c.l.b16 %v329
      %v375 = vunpack.c.h.b16 %v329
      %v376 = vunpack.c.l.b16 %v330
      %v377 = vunpack.c.h.b16 %v330
      %v378 = vunpack.c.l.b16 %v331
      %v379 = vunpack.c.h.b16 %v331
      %v380 = vpack.c.b16 %v348, %v348
      %v381 = vpack.c.b16 %v349, %v349
      %v382 = vpack.c.b16 %v350, %v350
      %v383 = vpack.c.b16 %v351, %v351
      %v384 = vpack.c.b16 %v352, %v352
      %v385 = vpack.c.b16 %v353, %v353
      %v386 = vpack.c.b16 %v354, %v354
      %v387 = vpack.c.b16 %v355, %v355
      %v388 = vpack.c.b16 %v356, %v356
      %v389 = vpack.c.b16 %v357, %v357
      %v390 = vpack.c.b16 %v358, %v358
      %v391 = vpack.c.b16 %v359, %v359
      %v392 = vpack.c.b16 %v360, %v360
      %v393 = vpack.c.b16 %v361, %v361
      %v394 = vpack.c.b16 %v362, %v362
      %v395 = vpack.c.b16 %v363, %v363
      %v396 = vpack.c.b16 %v364, %v364
      %v397 = vpack.c.b16 %v365, %v365
      %v398 = vpack.c.b16 %v366, %v366
      %v399 = vpack.c.b16 %v367, %v367
      %v400 = vpack.c.b16 %v368, %v368
      %v401 = vpack.c.b16 %v369, %v369
      %v402 = vpack.c.b16 %v370, %v370
      %v403 = vpack.c.b16 %v371, %v371
      %v404 = vpack.c.b16 %v372, %v372
      %v405 = vpack.c.b16 %v373, %v373
      %v406 = vpack.c.b16 %v374, %v374
      %v407 = vpack.c.b16 %v375, %v375
      %v408 = vpack.c.b16 %v376, %v376
      %v409 = vpack.c.b16 %v377, %v377
      %v410 = vpack.c.b16 %v378, %v378
      %v411 = vpack.c.b16 %v379, %v379
      %444 = vst [vmem:[%s172] sm:$0xf] %v380
      %445 = vst [vmem:[%s172 + $0x4] sm:$0xf] %v381
      %446 = vst [vmem:[%s172 + $0x8] sm:$0xf] %v382
      %447 = vst [vmem:[%s172 + $0xc] sm:$0xf] %v383
      %448 = vst [vmem:[%s172 + $0x10] sm:$0xf] %v384
      %449 = vst [vmem:[%s172 + $0x14] sm:$0xf] %v385
      %450 = vst [vmem:[%s172 + $0x18] sm:$0xf] %v386
      %451 = vst [vmem:[%s172 + $0x1c] sm:$0xf] %v387
      %452 = vst [vmem:[%s172 + $0x20] sm:$0xf] %v388
      %453 = vst [vmem:[%s172 + $0x24] sm:$0xf] %v389
      %454 = vst [vmem:[%s172 + $0x28] sm:$0xf] %v390
      %455 = vst [vmem:[%s172 + $0x2c] sm:$0xf] %v391
      %456 = vst [vmem:[%s172 + $0x30] sm:$0xf] %v392
      %457 = vst [vmem:[%s172 + $0x34] sm:$0xf] %v393
      %458 = vst [vmem:[%s172 + $0x38] sm:$0xf] %v394
      %459 = vst [vmem:[%s172 + $0x3c] sm:$0xf] %v395
      %460 = vst [vmem:[%s172 + $0x40] sm:$0xf] %v396
      %461 = vst [vmem:[%s172 + $0x44] sm:$0xf] %v397
      %462 = vst [vmem:[%s172 + $0x48] sm:$0xf] %v398
      %463 = vst [vmem:[%s172 + $0x4c] sm:$0xf] %v399
      %464 = vst [vmem:[%s172 + $0x50] sm:$0xf] %v400
      %465 = vst [vmem:[%s172 + $0x54] sm:$0xf] %v401
      %466 = vst [vmem:[%s172 + $0x58] sm:$0xf] %v402
      %467 = vst [vmem:[%s172 + $0x5c] sm:$0xf] %v403
      %468 = vst [vmem:[%s172 + $0x60] sm:$0xf] %v404
      %469 = vst [vmem:[%s172 + $0x64] sm:$0xf] %v405
      %470 = vst [vmem:[%s172 + $0x68] sm:$0xf] %v406
      %471 = vst [vmem:[%s172 + $0x6c] sm:$0xf] %v407
      %472 = vst [vmem:[%s172 + $0x70] sm:$0xf] %v408
      %473 = vst [vmem:[%s172 + $0x74] sm:$0xf] %v409
      %474 = vst [vmem:[%s172 + $0x78] sm:$0xf] %v410
      %475 = vst [vmem:[%s172 + $0x7c] sm:$0xf] %v411
      %s476 = smul.u32 32, %s14
      %p477 = scmp.lt.s32.totalorder %s476, 63
      %s478 = scalar_select %p477, %s476, 63
      %s479 = smul.addr %s478, 4
      %s480 = scalar_lea.vmem %s3, %s479
      // Predicated region
      $region33: #{decoder_block_forward.7} parent=31 // pred_check
        %p481 = pneg %p100
      $region34: #{decoder_block_forward.7} parent=31 // pred_check_branch
        %483 = sbr.rel (%p481) target = $region36
      $region35: #{decoder_block_forward.7} parent=31 // pred_region
        %s484 = smul.u32 32, %s14
      $region36: #{decoder_block_forward.7} parent=31 // pred_fallthru
        _
    $region32: #{decoder_block_forward.7} parent=5 // pred_fallthru
      _
    %p485 = scmp.le.s32.totalorder 2, %s9
    // Predicated region
    $region37: #{decoder_block_forward.7} parent=5 // pred_check
      %p486 = pneg %p485
    $region38: #{decoder_block_forward.7} parent=5 // pred_check_branch
      %488 = sbr.rel (%p486) target = $region40
    $region39: #{decoder_block_forward.7} parent=5 // pred_region
      %s489 = ssub.s32 %s9, 2
      // Predicated region
      $region41: #{decoder_block_forward.7} parent=39 // pred_check
        %p490 = pneg %p106
      $region42: #{decoder_block_forward.7} parent=39 // pred_check_branch
        %492 = sbr.rel (%p490) target = $region44
      $region43: #{decoder_block_forward.7} parent=39 // pred_region
        %s493 = smul.u32 32, %s15
        %p494 = scmp.lt.s32.totalorder %s493, 63
        %s495 = scalar_select %p494, %s493, 63
        %s496 = smul.addr %s495, 4
        %s497 = scalar_lea.vmem %s3, %s496
      $region44: #{decoder_block_forward.7} parent=39 // pred_fallthru
        _
    $region40: #{decoder_block_forward.7} parent=5 // pred_fallthru
      _
  $region6: #{decoder_block_forward.7} parent=0 // loop_footer
    %s13 = sadd.s32 1, %s9
  $region7: #{decoder_block_forward.7} parent=0 // loop_footer_branch
    %8 = sbr.rel target = $region3
  $region8: #{decoder_block_forward.7} parent=0 // loop_exit
    _

// kernel: decoder_block_forward.9
$region0: #{decoder_block_forward.9}
  #allocation0 [shape = 'u32[]', space=smem, size = 0x4, offset = 0x4, fixed_abs, tag = 'smem constant byte address 0x4 - core index']
  #allocation1 [shape = 'u32[144,128]{1,0:T(1,128)}', space=vmem, size = 0x12000, scoped, tag = 'internal scratch']
  %s0 = inlined_call_operand.vmem [shape: f32[512,128], index: 0, kind: input, shape index: {}]
  %s1 = inlined_call_operand.vmem [shape: f32[1,128], index: 1, kind: input, shape index: {}]
  %s2 = inlined_call_operand.vmem [shape: f32[1,128], index: 2, kind: input, shape index: {}]
  %s3 = inlined_call_operand.vmem [shape: f32[512,128], index: 3, kind: output, shape index: {}]
  %s4 = sld [smem:[#allocation0]]
  $region45: #{decoder_block_forward.9} parent=0
    _
  %s6 = ssub.s32 1, %s4
  %s7 = scalar_select 0, %s6, %s4
  loop: start=0, step=1, limit=4
  $region2: #{decoder_block_forward.9} parent=0 // loop_pre_header
    _
  $region3: #{decoder_block_forward.9} parent=0 // loop_header
    %s9 = sphi 0, %s13
    %p10 = scmp.ge.s32.totalorder %s9, 4
    %s19 = sphi 0, %s21
    %s22 = sphi 0, %s19
    %s23 = sphi 0, %s22
    %s39 = sphi 0, %s23
    %s43 = sphi 0, %s43
    %s45 = sphi 0, %s43
    %s46 = sphi 0, %s45
    %s60 = sphi 0, %s46
    %s64 = sphi 0, %s64
    %s66 = sphi 0, %s64
    %s67 = sphi 0, %s66
    %s81 = sphi 0, %s67
    %s87 = sphi 0, %s89
    %s90 = sphi 0, %s87
    %s91 = sphi 0, %s90
    %s107 = sphi 0, %s91
  $region4: #{decoder_block_forward.9} parent=0 // loop_header_branch
    %12 = sbr.rel (%p10) target = $region8
  $region5: #{decoder_block_forward.9} parent=0 // loop_body
    %s14 = ssub.s32 %s9, 1
    %s15 = ssub.s32 %s9, 2
    %s16 = sadd.s32 %s9, 1
    %s17 = ssub.s32 %s9, %s16
    %p18 = scmp.eq.s32.totalorder %s17, 0
    %s20 = sadd.s32 %s19, 1
    %s21 = scalar_select %p18, %s19, %s20
    %p24 = pneg %p18
    %p25 = scmp.eq.s32.totalorder %s9, 1
    %p26 = por %p24, %p25
    %p27 = scmp.ne.s32.totalorder %s19, %s22
    %p28 = scmp.eq.s32.totalorder %s9, 0
    %p29 = por %p27, %p28
    %p30 = scmp.ne.s32.totalorder %s19, %s22
    %p31 = scmp.eq.s32.totalorder %s14, 1
    %p32 = por %p30, %p31
    %p33 = scmp.ne.s32.totalorder %s22, %s23
    %p34 = scmp.eq.s32.totalorder %s14, 0
    %p35 = por %p33, %p34
    %p36 = scmp.ne.s32.totalorder %s22, %s23
    %p37 = scmp.eq.s32.totalorder %s15, 1
    %p38 = por %p36, %p37
    %p40 = scmp.ne.s32.totalorder %s23, %s39
    %p41 = scmp.eq.s32.totalorder %s15, 0
    %p42 = por %p40, %p41
    %s44 = sadd.s32 %s43, 1
    %p47 = scmp.eq.s32.totalorder %s9, 1
    %p48 = scmp.ne.s32.totalorder %s43, %s45
    %p49 = scmp.eq.s32.totalorder %s9, 0
    %p50 = por %p48, %p49
    %p51 = scmp.ne.s32.totalorder %s43, %s45
    %p52 = scmp.eq.s32.totalorder %s14, 1
    %p53 = por %p51, %p52
    %p54 = scmp.ne.s32.totalorder %s45, %s46
    %p55 = scmp.eq.s32.totalorder %s14, 0
    %p56 = por %p54, %p55
    %p57 = scmp.ne.s32.totalorder %s45, %s46
    %p58 = scmp.eq.s32.totalorder %s15, 1
    %p59 = por %p57, %p58
    %p61 = scmp.ne.s32.totalorder %s46, %s60
    %p62 = scmp.eq.s32.totalorder %s15, 0
    %p63 = por %p61, %p62
    %s65 = sadd.s32 %s64, 1
    %p68 = scmp.eq.s32.totalorder %s9, 1
    %p69 = scmp.ne.s32.totalorder %s64, %s66
    %p70 = scmp.eq.s32.totalorder %s9, 0
    %p71 = por %p69, %p70
    %p72 = scmp.ne.s32.totalorder %s64, %s66
    %p73 = scmp.eq.s32.totalorder %s14, 1
    %p74 = por %p72, %p73
    %p75 = scmp.ne.s32.totalorder %s66, %s67
    %p76 = scmp.eq.s32.totalorder %s14, 0
    %p77 = por %p75, %p76
    %p78 = scmp.ne.s32.totalorder %s66, %s67
    %p79 = scmp.eq.s32.totalorder %s15, 1
    %p80 = por %p78, %p79
    %p82 = scmp.ne.s32.totalorder %s67, %s81
    %p83 = scmp.eq.s32.totalorder %s15, 0
    %p84 = por %p82, %p83
    %s85 = ssub.s32 %s9, %s16
    %p86 = scmp.eq.s32.totalorder %s85, 0
    %s88 = sadd.s32 %s87, 1
    %s89 = scalar_select %p86, %s87, %s88
    %p92 = pneg %p86
    %p93 = scmp.eq.s32.totalorder %s9, 1
    %p94 = por %p92, %p93
    %p95 = scmp.ne.s32.totalorder %s87, %s90
    %p96 = scmp.eq.s32.totalorder %s9, 0
    %p97 = por %p95, %p96
    %p98 = scmp.ne.s32.totalorder %s87, %s90
    %p99 = scmp.eq.s32.totalorder %s14, 1
    %p100 = por %p98, %p99
    %p101 = scmp.ne.s32.totalorder %s90, %s91
    %p102 = scmp.eq.s32.totalorder %s14, 0
    %p103 = por %p101, %p102
    %p104 = scmp.ne.s32.totalorder %s90, %s91
    %p105 = scmp.eq.s32.totalorder %s15, 1
    %p106 = por %p104, %p105
    %p108 = scmp.ne.s32.totalorder %s91, %s107
    %p109 = scmp.eq.s32.totalorder %s15, 0
    %p110 = por %p108, %p109
    %p111 = scmp.le.s32.totalorder 1, %s9
    %p112 = scmp.lt.s32.totalorder %s9, 3
    %p113 = pnand %p111, %p112
    %p114 = pneg %p113
    // Predicated region
    $region9: #{decoder_block_forward.9} parent=5 // pred_check
      _
    $region10: #{decoder_block_forward.9} parent=5 // pred_check_branch
      %116 = sbr.rel (%p113) target = $region12
    $region11: #{decoder_block_forward.9} parent=5 // pred_region
      %s117 = ssub.s32 %s9, 1
      // Predicated region
      $region13: #{decoder_block_forward.9} parent=11 // pred_check
        %p118 = pneg %p56
      $region14: #{decoder_block_forward.9} parent=11 // pred_check_branch
        %120 = sbr.rel (%p118) target = $region16
      $region15: #{decoder_block_forward.9} parent=11 // pred_region
        _
      $region16: #{decoder_block_forward.9} parent=11 // pred_fallthru
        _
      // Predicated region
      $region17: #{decoder_block_forward.9} parent=11 // pred_check
        %p121 = pneg %p77
      $region18: #{decoder_block_forward.9} parent=11 // pred_check_branch
        %123 = sbr.rel (%p121) target = $region20
      $region19: #{decoder_block_forward.9} parent=11 // pred_region
        _
      $region20: #{decoder_block_forward.9} parent=11 // pred_fallthru
        _
    $region12: #{decoder_block_forward.9} parent=5 // pred_fallthru
      _
    %p124 = scmp.lt.s32.totalorder %s9, 2
    // Predicated region
    $region21: #{decoder_block_forward.9} parent=5 // pred_check
      %p125 = pneg %p124
    $region22: #{decoder_block_forward.9} parent=5 // pred_check_branch
      %127 = sbr.rel (%p125) target = $region24
    $region23: #{decoder_block_forward.9} parent=5 // pred_region
      // Predicated region
      $region25: #{decoder_block_forward.9} parent=23 // pred_check
        %p128 = pneg %p29
      $region26: #{decoder_block_forward.9} parent=23 // pred_check_branch
        %130 = sbr.rel (%p128) target = $region28
      $region27: #{decoder_block_forward.9} parent=23 // pred_region
        %s131 = smul.u32 32, %s9
        %p132 = scmp.lt.s32.totalorder %s131, 63
        %s133 = scalar_select %p132, %s131, 63
        %s134 = smul.addr %s133, 8
        %s135 = scalar_lea.vmem %s0, %s134
        %s136 = smul.u32 32, %s9
      $region28: #{decoder_block_forward.9} parent=23 // pred_fallthru
        _
    $region24: #{decoder_block_forward.9} parent=5 // pred_fallthru
      _
    %p137 = scmp.le.s32.totalorder 1, %s9
    %p138 = scmp.lt.s32.totalorder %s9, 3
    %p139 = pnand %p137, %p138
    %p140 = pneg %p139
    // Predicated region
    $region29: #{decoder_block_forward.9} parent=5 // pred_check
      _
    $region30: #{decoder_block_forward.9} parent=5 // pred_check_branch
      %142 = sbr.rel (%p139) target = $region32
    $region31: #{decoder_block_forward.9} parent=5 // pred_region
      %s143 = ssub.s32 %s9, 1
      %s144 = smul.u32 32, %s14
      %p145 = scmp.lt.s32.totalorder %s144, 63
      %s146 = scalar_select %p145, %s144, 63
      %s147 = smul.addr %s146, 8
      %s148 = scalar_lea.vmem %s0, %s147
      %p149 = pneg %p35
      %p150 = pneg %p32
      %p151 = pneg %p56
      %p152 = pneg %p53
      %p153 = pneg %p77
      %p154 = pneg %p74
      %p155 = pneg %p103
      %p156 = pneg %p100
      %s157 = smul.u32 32, %s14
      %p158 = scmp.lt.s32.totalorder %s157, 63
      %s159 = scalar_select %p158, %s157, 63
      %s160 = smul.addr %s159, 8
      %s161 = scalar_lea.vmem %s3, %s160
      %s162 = smul.u32 32, %s14
      %p163 = scmp.lt.s32.totalorder %s162, 63
      %s164 = scalar_select %p163, %s162, 63
      %s165 = smul.addr %s164, 8
      %s166 = scalar_lea.vmem %s0, %s165
      %s167 = smul.u32 32, %s14
      %s168 = smul.u32 32, %s14
      %p169 = scmp.lt.s32.totalorder %s168, 63
      %s170 = scalar_select %p169, %s168, 63
      %s171 = smul.addr %s170, 8
      %s172 = scalar_lea.vmem %s3, %s171
      %s173 = smul.u32 32, %s14
      %v174 = vld [vmem:[%s166] sm:$0xff]
      %v175 = vld [vmem:[%s166 + $0x8] sm:$0xff]
      %v176 = vld [vmem:[%s166 + $0x10] sm:$0xff]
      %v177 = vld [vmem:[%s166 + $0x18] sm:$0xff]
      %v178 = vld [vmem:[%s166 + $0x20] sm:$0xff]
      %v179 = vld [vmem:[%s166 + $0x28] sm:$0xff]
      %v180 = vld [vmem:[%s166 + $0x30] sm:$0xff]
      %v181 = vld [vmem:[%s166 + $0x38] sm:$0xff]
      %v182 = vld [vmem:[%s166 + $0x40] sm:$0xff]
      %v183 = vld [vmem:[%s166 + $0x48] sm:$0xff]
      %v184 = vld [vmem:[%s166 + $0x50] sm:$0xff]
      %v185 = vld [vmem:[%s166 + $0x58] sm:$0xff]
      %v186 = vld [vmem:[%s166 + $0x60] sm:$0xff]
      %v187 = vld [vmem:[%s166 + $0x68] sm:$0xff]
      %v188 = vld [vmem:[%s166 + $0x70] sm:$0xff]
      %v189 = vld [vmem:[%s166 + $0x78] sm:$0xff]
      %v190 = vld [vmem:[%s166 + $0x80] sm:$0xff]
      %v191 = vld [vmem:[%s166 + $0x88] sm:$0xff]
      %v192 = vld [vmem:[%s166 + $0x90] sm:$0xff]
      %v193 = vld [vmem:[%s166 + $0x98] sm:$0xff]
      %v194 = vld [vmem:[%s166 + $0xa0] sm:$0xff]
      %v195 = vld [vmem:[%s166 + $0xa8] sm:$0xff]
      %v196 = vld [vmem:[%s166 + $0xb0] sm:$0xff]
      %v197 = vld [vmem:[%s166 + $0xb8] sm:$0xff]
      %v198 = vld [vmem:[%s166 + $0xc0] sm:$0xff]
      %v199 = vld [vmem:[%s166 + $0xc8] sm:$0xff]
      %v200 = vld [vmem:[%s166 + $0xd0] sm:$0xff]
      %v201 = vld [vmem:[%s166 + $0xd8] sm:$0xff]
      %v202 = vld [vmem:[%s166 + $0xe0] sm:$0xff]
      %v203 = vld [vmem:[%s166 + $0xe8] sm:$0xff]
      %v204 = vld [vmem:[%s166 + $0xf0] sm:$0xff]
      %v205 = vld [vmem:[%s166 + $0xf8] sm:$0xff]
      %v206 = vld [vmem:[%s1] sm:$0x1]
      %v208 = vlaneseq
      %v209 = vshrl.u32 %v208, 7
      %v210 = vsub.s32 0, %v209
      %v211 = vrot.slane %v206, %v210
      %v213 = vmul.f32 %v174, %v211
      %v214 = vmul.f32 %v175, %v211
      %v215 = vmul.f32 %v176, %v211
      %v216 = vmul.f32 %v177, %v211
      %v217 = vmul.f32 %v178, %v211
      %v218 = vmul.f32 %v179, %v211
      %v219 = vmul.f32 %v180, %v211
      %v220 = vmul.f32 %v181, %v211
      %v221 = vmul.f32 %v182, %v211
      %v222 = vmul.f32 %v183, %v211
      %v223 = vmul.f32 %v184, %v211
      %v224 = vmul.f32 %v185, %v211
      %v225 = vmul.f32 %v186, %v211
      %v226 = vmul.f32 %v187, %v211
      %v227 = vmul.f32 %v188, %v211
      %v228 = vmul.f32 %v189, %v211
      %v229 = vmul.f32 %v190, %v211
      %v230 = vmul.f32 %v191, %v211
      %v231 = vmul.f32 %v192, %v211
      %v232 = vmul.f32 %v193, %v211
      %v233 = vmul.f32 %v194, %v211
      %v234 = vmul.f32 %v195, %v211
      %v235 = vmul.f32 %v196, %v211
      %v236 = vmul.f32 %v197, %v211
      %v237 = vmul.f32 %v198, %v211
      %v238 = vmul.f32 %v199, %v211
      %v239 = vmul.f32 %v200, %v211
      %v240 = vmul.f32 %v201, %v211
      %v241 = vmul.f32 %v202, %v211
      %v242 = vmul.f32 %v203, %v211
      %v243 = vmul.f32 %v204, %v211
      %v244 = vmul.f32 %v205, %v211
      %v245 = vld [vmem:[%s2] sm:$0x1]
      %v247 = vlaneseq
      %v248 = vshrl.u32 %v247, 7
      %v249 = vsub.s32 0, %v248
      %v250 = vrot.slane %v245, %v249
      %v252 = vadd.f32 %v213, %v250
      %v253 = vadd.f32 %v214, %v250
      %v254 = vadd.f32 %v215, %v250
      %v255 = vadd.f32 %v216, %v250
      %v256 = vadd.f32 %v217, %v250
      %v257 = vadd.f32 %v218, %v250
      %v258 = vadd.f32 %v219, %v250
      %v259 = vadd.f32 %v220, %v250
      %v260 = vadd.f32 %v221, %v250
      %v261 = vadd.f32 %v222, %v250
      %v262 = vadd.f32 %v223, %v250
      %v263 = vadd.f32 %v224, %v250
      %v264 = vadd.f32 %v225, %v250
      %v265 = vadd.f32 %v226, %v250
      %v266 = vadd.f32 %v227, %v250
      %v267 = vadd.f32 %v228, %v250
      %v268 = vadd.f32 %v229, %v250
      %v269 = vadd.f32 %v230, %v250
      %v270 = vadd.f32 %v231, %v250
      %v271 = vadd.f32 %v232, %v250
      %v272 = vadd.f32 %v233, %v250
      %v273 = vadd.f32 %v234, %v250
      %v274 = vadd.f32 %v235, %v250
      %v275 = vadd.f32 %v236, %v250
      %v276 = vadd.f32 %v237, %v250
      %v277 = vadd.f32 %v238, %v250
      %v278 = vadd.f32 %v239, %v250
      %v279 = vadd.f32 %v240, %v250
      %v280 = vadd.f32 %v241, %v250
      %v281 = vadd.f32 %v242, %v250
      %v282 = vadd.f32 %v243, %v250
      %v283 = vadd.f32 %v244, %v250
      %v284 = vmax.f32 %v252, 0.0
      %v285 = vmax.f32 %v253, 0.0
      %v286 = vmax.f32 %v254, 0.0
      %v287 = vmax.f32 %v255, 0.0
      %v288 = vmax.f32 %v256, 0.0
      %v289 = vmax.f32 %v257, 0.0
      %v290 = vmax.f32 %v258, 0.0
      %v291 = vmax.f32 %v259, 0.0
      %v292 = vmax.f32 %v260, 0.0
      %v293 = vmax.f32 %v261, 0.0
      %v294 = vmax.f32 %v262, 0.0
      %v295 = vmax.f32 %v263, 0.0
      %v296 = vmax.f32 %v264, 0.0
      %v297 = vmax.f32 %v265, 0.0
      %v298 = vmax.f32 %v266, 0.0
      %v299 = vmax.f32 %v267, 0.0
      %v300 = vmax.f32 %v268, 0.0
      %v301 = vmax.f32 %v269, 0.0
      %v302 = vmax.f32 %v270, 0.0
      %v303 = vmax.f32 %v271, 0.0
      %v304 = vmax.f32 %v272, 0.0
      %v305 = vmax.f32 %v273, 0.0
      %v306 = vmax.f32 %v274, 0.0
      %v307 = vmax.f32 %v275, 0.0
      %v308 = vmax.f32 %v276, 0.0
      %v309 = vmax.f32 %v277, 0.0
      %v310 = vmax.f32 %v278, 0.0
      %v311 = vmax.f32 %v279, 0.0
      %v312 = vmax.f32 %v280, 0.0
      %v313 = vmax.f32 %v281, 0.0
      %v314 = vmax.f32 %v282, 0.0
      %v315 = vmax.f32 %v283, 0.0
      %316 = vst [vmem:[%s172] sm:$0xff] %v284
      %317 = vst [vmem:[%s172 + $0x8] sm:$0xff] %v285
      %318 = vst [vmem:[%s172 + $0x10] sm:$0xff] %v286
      %319 = vst [vmem:[%s172 + $0x18] sm:$0xff] %v287
      %320 = vst [vmem:[%s172 + $0x20] sm:$0xff] %v288
      %321 = vst [vmem:[%s172 + $0x28] sm:$0xff] %v289
      %322 = vst [vmem:[%s172 + $0x30] sm:$0xff] %v290
      %323 = vst [vmem:[%s172 + $0x38] sm:$0xff] %v291
      %324 = vst [vmem:[%s172 + $0x40] sm:$0xff] %v292
      %325 = vst [vmem:[%s172 + $0x48] sm:$0xff] %v293
      %326 = vst [vmem:[%s172 + $0x50] sm:$0xff] %v294
      %327 = vst [vmem:[%s172 + $0x58] sm:$0xff] %v295
      %328 = vst [vmem:[%s172 + $0x60] sm:$0xff] %v296
      %329 = vst [vmem:[%s172 + $0x68] sm:$0xff] %v297
      %330 = vst [vmem:[%s172 + $0x70] sm:$0xff] %v298
      %331 = vst [vmem:[%s172 + $0x78] sm:$0xff] %v299
      %332 = vst [vmem:[%s172 + $0x80] sm:$0xff] %v300
      %333 = vst [vmem:[%s172 + $0x88] sm:$0xff] %v301
      %334 = vst [vmem:[%s172 + $0x90] sm:$0xff] %v302
      %335 = vst [vmem:[%s172 + $0x98] sm:$0xff] %v303
      %336 = vst [vmem:[%s172 + $0xa0] sm:$0xff] %v304
      %337 = vst [vmem:[%s172 + $0xa8] sm:$0xff] %v305
      %338 = vst [vmem:[%s172 + $0xb0] sm:$0xff] %v306
      %339 = vst [vmem:[%s172 + $0xb8] sm:$0xff] %v307
      %340 = vst [vmem:[%s172 + $0xc0] sm:$0xff] %v308
      %341 = vst [vmem:[%s172 + $0xc8] sm:$0xff] %v309
      %342 = vst [vmem:[%s172 + $0xd0] sm:$0xff] %v310
      %343 = vst [vmem:[%s172 + $0xd8] sm:$0xff] %v311
      %344 = vst [vmem:[%s172 + $0xe0] sm:$0xff] %v312
      %345 = vst [vmem:[%s172 + $0xe8] sm:$0xff] %v313
      %346 = vst [vmem:[%s172 + $0xf0] sm:$0xff] %v314
      %347 = vst [vmem:[%s172 + $0xf8] sm:$0xff] %v315
      %s348 = smul.u32 32, %s14
      %p349 = scmp.lt.s32.totalorder %s348, 63
      %s350 = scalar_select %p349, %s348, 63
      %s351 = smul.addr %s350, 8
      %s352 = scalar_lea.vmem %s3, %s351
      // Predicated region
      $region33: #{decoder_block_forward.9} parent=31 // pred_check
        %p353 = pneg %p100
      $region34: #{decoder_block_forward.9} parent=31 // pred_check_branch
        %355 = sbr.rel (%p353) target = $region36
      $region35: #{decoder_block_forward.9} parent=31 // pred_region
        %s356 = smul.u32 32, %s14
      $region36: #{decoder_block_forward.9} parent=31 // pred_fallthru
        _
    $region32: #{decoder_block_forward.9} parent=5 // pred_fallthru
      _
    %p357 = scmp.le.s32.totalorder 2, %s9
    // Predicated region
    $region37: #{decoder_block_forward.9} parent=5 // pred_check
      %p358 = pneg %p357
    $region38: #{decoder_block_forward.9} parent=5 // pred_check_branch
      %360 = sbr.rel (%p358) target = $region40
    $region39: #{decoder_block_forward.9} parent=5 // pred_region
      %s361 = ssub.s32 %s9, 2
      // Predicated region
      $region41: #{decoder_block_forward.9} parent=39 // pred_check
        %p362 = pneg %p106
      $region42: #{decoder_block_forward.9} parent=39 // pred_check_branch
        %364 = sbr.rel (%p362) target = $region44
      $region43: #{decoder_block_forward.9} parent=39 // pred_region
        %s365 = smul.u32 32, %s15
        %p366 = scmp.lt.s32.totalorder %s365, 63
        %s367 = scalar_select %p366, %s365, 63
        %s368 = smul.addr %s367, 8
        %s369 = scalar_lea.vmem %s3, %s368
      $region44: #{decoder_block_forward.9} parent=39 // pred_fallthru
        _
    $region40: #{decoder_block_forward.9} parent=5 // pred_fallthru
      _
  $region6: #{decoder_block_forward.9} parent=0 // loop_footer
    %s13 = sadd.s32 1, %s9
  $region7: #{decoder_block_forward.9} parent=0 // loop_footer_branch
    %8 = sbr.rel target = $region3
  $region8: #{decoder_block_forward.9} parent=0 // loop_exit
    _

</llo_original>
